<compile_context>
chip_gen: v7x
topology: tpu7x:2x2x1
jax: 0.10.0
libtpu: 0.0.40
codegen_flags: <defaults>
</compile_context>

<pallas_src>
import functools

import jax
import jax.numpy as jnp
from jax.experimental import pallas as pl
from jax.experimental.pallas import tpu as pltpu

BN_EPS = 1e-5
IN_PAD = 128      # pad in_features to a full 128-lane tile
HEAD_PAD = 128    # pad classifier output lanes to a full 128-lane vreg width
MAX_M_TILE = 256  # M tile for batched serving (256 on v6e/v7x class parts)


def _round_up(x, m):
    return (x + m - 1) // m * m


# ----------------------------- Pallas kernel ------------------------------- #

def _make_fcn_kernel(n_layers, bias_offsets, bias_sizes):
    """Fused forward: n_layers of (matmul + bias [+ relu]); last layer no relu.

    refs = (x_ref, w_0..w_{n-1}, bcat_ref, o_ref).
    Hidden-layer weights are bf16 (BN folded); head weight is f32.
    Biases live in one concatenated (1, sum_N) f32 buffer, sliced with static,
    lane-aligned offsets.
    """

    def kernel(*refs):
        x_ref = refs[0]
        o_ref = refs[-1]
        bcat_ref = refs[-2]
        w_refs = refs[1:1 + n_layers]

        h = x_ref[...]                              # (tm, K_pad) f32
        for l in range(n_layers):
            w_ref = w_refs[l]
            off = bias_offsets[l]
            n = bias_sizes[l]
            b = bcat_ref[:, off:off + n]            # static lane-aligned slice
            z = jnp.dot(h.astype(w_ref.dtype), w_ref[...],
                        preferred_element_type=jnp.float32)
            z = z + b                               # f32 epilogue (v5e-safe)
            if l < n_layers - 1:
                z = jnp.maximum(z, 0.0)             # ReLU on hidden layers only
            # Dropout: identity in eval mode.
            h = z
        o_ref[...] = h.astype(o_ref.dtype)

    return kernel


# ------------------------------ host wrapper ------------------------------- #

def fcn_forward_fused(x, ws, bcat, n_classes):
    """x: (M, in_features) f32.  ws[i]: (K_i, N_i) (bf16 hidden, f32 head).
    bcat: (1, sum_i N_i) f32 concatenated biases."""
    M, K = x.shape
    K_pad = ws[0].shape[0]
    n_layers = len(ws)

    sizes = tuple(int(w.shape[1]) for w in ws)
    offsets = tuple(int(sum(sizes[:l])) for l in range(n_layers))

    # Pad feature dim to the (lane-dense) padded contraction size of layer 0.
    if K < K_pad:
        x = jnp.pad(x, ((0, 0), (0, K_pad - K)))

    # Tile the batch dimension; weights stay VMEM-resident across M tiles
    # because their index_maps are constant in the grid axis.
    tm = min(MAX_M_TILE, _round_up(M, 8))
    M_pad = _round_up(M, tm)
    if M_pad > M:
        x = jnp.pad(x, ((0, M_pad - M), (0, 0)))
    grid_m = M_pad // tm

    in_specs = [pl.BlockSpec((tm, K_pad), lambda i: (i, 0))]
    for w in ws:
        in_specs.append(pl.BlockSpec(w.shape, lambda i: (0, 0)))
    in_specs.append(pl.BlockSpec(bcat.shape, lambda i: (0, 0)))

    out_pad = pl.pallas_call(
        _make_fcn_kernel(n_layers, offsets, sizes),
        out_shape=jax.ShapeDtypeStruct((M_pad, HEAD_PAD), jnp.float32),
        grid=(grid_m,),
        in_specs=in_specs,
        out_specs=pl.BlockSpec((tm, HEAD_PAD), lambda i: (i, 0)),
        compiler_params=pltpu.CompilerParams(
            dimension_semantics=("parallel",)),
    )(x, *ws, bcat)
    return out_pad[:M, :n_classes]


@functools.partial(jax.jit, static_argnames=("n_classes",))
def fcn_forward(x, ws, bcat, n_classes):
    return fcn_forward_fused(x, ws, bcat, n_classes)


# --------------------------- parameter construction ------------------------ #

def init_fcn_params(key, in_features, hidden_sizes, n_classes):
    """Deterministic synthetic params matching the PyTorch module shapes, with
    BatchNorm (eval) folded into the linears, hidden weights in bf16, the head
    in f32, contraction dims padded to 128, and biases concatenated."""
    ws, b_parts = [], []
    prev = in_features
    prev_pad = _round_up(in_features, IN_PAD)
    for h in hidden_sizes:
        key, kw, kb, kg, kbeta, kmu, kvar = jax.random.split(key, 7)
        scale = 1.0 / jnp.sqrt(jnp.float32(prev))
        w = jax.random.uniform(kw, (prev, h), jnp.float32, -scale, scale)
        b = jax.random.uniform(kb, (h,), jnp.float32, -scale, scale)
        gamma = 1.0 + 0.1 * jax.random.normal(kg, (h,), jnp.float32)
        beta = 0.1 * jax.random.normal(kbeta, (h,), jnp.float32)
        mean = 0.1 * jax.random.normal(kmu, (h,), jnp.float32)
        var = jnp.abs(1.0 + 0.1 * jax.random.normal(kvar, (h,), jnp.float32))
        # Fold BN (inference mode) into the linear layer.
        s = gamma * jax.lax.rsqrt(var + BN_EPS)                  # (h,)
        w_fold = w * s[None, :]                                  # (prev, h)
        b_fold = (b - mean) * s + beta                           # (h,)
        # Zero-pad contraction dim (only layer 0 actually pads 64 -> 128).
        w_pad = jnp.zeros((prev_pad, h), jnp.float32).at[:prev, :].set(w_fold)
        ws.append(w_pad.astype(jnp.bfloat16))
        b_parts.append(b_fold.astype(jnp.float32))
        prev = h
        prev_pad = h  # hidden sizes are multiples of 128 already

    # Classifier head, padded to HEAD_PAD output columns (zeros), kept in f32.
    key, kw, kb = jax.random.split(key, 3)
    scale = 1.0 / jnp.sqrt(jnp.float32(prev))
    w_head = jax.random.uniform(kw, (prev, n_classes), jnp.float32, -scale, scale)
    b_head = jax.random.uniform(kb, (n_classes,), jnp.float32, -scale, scale)
    w_head_pad = (jnp.zeros((prev_pad, HEAD_PAD), jnp.float32)
                  .at[:prev, :n_classes].set(w_head))
    b_head_pad = jnp.zeros((HEAD_PAD,), jnp.float32).at[:n_classes].set(b_head)
    ws.append(w_head_pad)                 # f32 head
    b_parts.append(b_head_pad)

    bcat = jnp.concatenate(b_parts).reshape(1, -1)   # (1, 2048) f32
    return ws, bcat


# ------------------------------ pure-JAX reference ------------------------- #

def reference_forward(x, ws, bcat, n_classes):
    """f32 reference that mimics the kernel's bf16 activation/weight casts."""
    sizes = [w.shape[1] for w in ws]
    offsets = [sum(sizes[:l]) for l in range(len(ws))]
    K_pad = ws[0].shape[0]
    h = jnp.pad(x, ((0, 0), (0, K_pad - x.shape[1])))
    for l, w in enumerate(ws):
        b = bcat[:, offsets[l]:offsets[l] + sizes[l]]
        z = jnp.dot(h.astype(w.dtype).astype(jnp.float32),
                    w.astype(jnp.float32)) + b
        h = jnp.maximum(z, 0.0) if l < len(ws) - 1 else z
    return h[:, :n_classes]


# ---------------------------------- main ----------------------------------- #

if __name__ == "__main__":
    in_features = 64
    hidden_sizes = [1024, 512, 256, 128]   # module defaults
    n_classes = 5
    batch = 8

    key = jax.random.PRNGKey(0)
    key, kx = jax.random.split(key)
    x = jax.random.normal(kx, (batch, in_features), jnp.float32)

    ws, bcat = init_fcn_params(key, in_features, hidden_sizes, n_classes)

    out = fcn_forward(x, ws, bcat, n_classes)
    out = jax.block_until_ready(out)
    assert out.shape == (batch, n_classes), out.shape
    assert bool(jnp.all(jnp.isfinite(out)))

    ref = reference_forward(x, ws, bcat, n_classes)
    assert bool(jnp.allclose(out, ref, rtol=2e-2, atol=2e-2)), \
        float(jnp.max(jnp.abs(out - ref)))
    print("KERNEL_OK")
</pallas_src>

<mosaic_0001>
module attributes {stable_mosaic.version = 11 : i64} {
  func.func @kernel(%arg0: i32, %arg1: memref<8x128xf32, #tpu.memory_space<vmem>>, %arg2: memref<128x1024xbf16, #tpu.memory_space<vmem>>, %arg3: memref<1024x512xbf16, #tpu.memory_space<vmem>>, %arg4: memref<512x256xbf16, #tpu.memory_space<vmem>>, %arg5: memref<256x128xbf16, #tpu.memory_space<vmem>>, %arg6: memref<128x128xf32, #tpu.memory_space<vmem>>, %arg7: memref<1x2048xf32, #tpu.memory_space<vmem>>, %arg8: memref<8x128xf32, #tpu.memory_space<vmem>>) attributes {dimension_semantics = [#tpu.dimension_semantics<parallel>], iteration_bounds = array<i64: 1>, scalar_prefetch = 0 : i64, scratch_operands = 0 : i64, tpu.core_type = #tpu.core_type<tc>, window_params = [{transform_indices = @transform_0, window_bounds = array<i64: 8, 128>}, {pipeline_mode = #tpu.pipeline_mode<synchronous>, transform_indices = @transform_1, window_bounds = array<i64: 128, 1024>}, {pipeline_mode = #tpu.pipeline_mode<synchronous>, transform_indices = @transform_2, window_bounds = array<i64: 1024, 512>}, {pipeline_mode = #tpu.pipeline_mode<synchronous>, transform_indices = @transform_3, window_bounds = array<i64: 512, 256>}, {pipeline_mode = #tpu.pipeline_mode<synchronous>, transform_indices = @transform_4, window_bounds = array<i64: 256, 128>}, {pipeline_mode = #tpu.pipeline_mode<synchronous>, transform_indices = @transform_5, window_bounds = array<i64: 128, 128>}, {pipeline_mode = #tpu.pipeline_mode<synchronous>, transform_indices = @transform_6, window_bounds = array<i64: 1, 2048>}, {transform_indices = @transform_7, window_bounds = array<i64: 8, 128>}]} {
    %c0 = arith.constant 0 : index
    %c0_0 = arith.constant 0 : index
    %0 = vector.load %arg1[%c0, %c0_0] : memref<8x128xf32, #tpu.memory_space<vmem>>, vector<8x128xf32>
    %c0_1 = arith.constant 0 : index
    %c0_2 = arith.constant 0 : index
    %1 = vector.load %arg7[%c0_1, %c0_2] : memref<1x2048xf32, #tpu.memory_space<vmem>>, vector<1x1024xf32>
    %2 = arith.truncf %0 : vector<8x128xf32> to vector<8x128xbf16>
    %c0_3 = arith.constant 0 : index
    %c0_4 = arith.constant 0 : index
    %3 = vector.load %arg2[%c0_3, %c0_4] : memref<128x1024xbf16, #tpu.memory_space<vmem>>, vector<128x1024xbf16>
    %cst = arith.constant dense<0.000000e+00> : vector<8x1024xf32>
    %4 = tpu.matmul %2, %3, %cst {dimension_numbers = #tpu.dot_dimension_numbers<[1], [0], [0], [1], [0, 0, 1, 1], [], []>} : vector<8x128xbf16>, vector<128x1024xbf16>, vector<8x1024xf32> -> vector<8x1024xf32>
    %5 = vector.broadcast %1 : vector<1x1024xf32> to vector<8x1024xf32>
    %6 = arith.addf %4, %5 : vector<8x1024xf32>
    %cst_5 = arith.constant 0.000000e+00 : f32
    %7 = vector.broadcast %cst_5 : f32 to vector<8x1024xf32>
    %8 = arith.maximumf %6, %7 : vector<8x1024xf32>
    %c0_6 = arith.constant 0 : index
    %c1024 = arith.constant 1024 : index
    %9 = vector.load %arg7[%c0_6, %c1024] : memref<1x2048xf32, #tpu.memory_space<vmem>>, vector<1x512xf32>
    %10 = arith.truncf %8 : vector<8x1024xf32> to vector<8x1024xbf16>
    %c0_7 = arith.constant 0 : index
    %c0_8 = arith.constant 0 : index
    %11 = vector.load %arg3[%c0_7, %c0_8] : memref<1024x512xbf16, #tpu.memory_space<vmem>>, vector<1024x512xbf16>
    %cst_9 = arith.constant dense<0.000000e+00> : vector<8x512xf32>
    %12 = tpu.matmul %10, %11, %cst_9 {dimension_numbers = #tpu.dot_dimension_numbers<[1], [0], [0], [1], [0, 0, 1, 1], [], []>} : vector<8x1024xbf16>, vector<1024x512xbf16>, vector<8x512xf32> -> vector<8x512xf32>
    %13 = vector.broadcast %9 : vector<1x512xf32> to vector<8x512xf32>
    %14 = arith.addf %12, %13 : vector<8x512xf32>
    %cst_10 = arith.constant 0.000000e+00 : f32
    %15 = vector.broadcast %cst_10 : f32 to vector<8x512xf32>
    %16 = arith.maximumf %14, %15 : vector<8x512xf32>
    %c0_11 = arith.constant 0 : index
    %c1536 = arith.constant 1536 : index
    %17 = vector.load %arg7[%c0_11, %c1536] : memref<1x2048xf32, #tpu.memory_space<vmem>>, vector<1x256xf32>
    %18 = arith.truncf %16 : vector<8x512xf32> to vector<8x512xbf16>
    %c0_12 = arith.constant 0 : index
    %c0_13 = arith.constant 0 : index
    %19 = vector.load %arg4[%c0_12, %c0_13] : memref<512x256xbf16, #tpu.memory_space<vmem>>, vector<512x256xbf16>
    %cst_14 = arith.constant dense<0.000000e+00> : vector<8x256xf32>
    %20 = tpu.matmul %18, %19, %cst_14 {dimension_numbers = #tpu.dot_dimension_numbers<[1], [0], [0], [1], [0, 0, 1, 1], [], []>} : vector<8x512xbf16>, vector<512x256xbf16>, vector<8x256xf32> -> vector<8x256xf32>
    %21 = vector.broadcast %17 : vector<1x256xf32> to vector<8x256xf32>
    %22 = arith.addf %20, %21 : vector<8x256xf32>
    %cst_15 = arith.constant 0.000000e+00 : f32
    %23 = vector.broadcast %cst_15 : f32 to vector<8x256xf32>
    %24 = arith.maximumf %22, %23 : vector<8x256xf32>
    %c0_16 = arith.constant 0 : index
    %c1792 = arith.constant 1792 : index
    %25 = vector.load %arg7[%c0_16, %c1792] : memref<1x2048xf32, #tpu.memory_space<vmem>>, vector<1x128xf32>
    %26 = arith.truncf %24 : vector<8x256xf32> to vector<8x256xbf16>
    %c0_17 = arith.constant 0 : index
    %c0_18 = arith.constant 0 : index
    %27 = vector.load %arg5[%c0_17, %c0_18] : memref<256x128xbf16, #tpu.memory_space<vmem>>, vector<256x128xbf16>
    %cst_19 = arith.constant dense<0.000000e+00> : vector<8x128xf32>
    %28 = tpu.matmul %26, %27, %cst_19 {dimension_numbers = #tpu.dot_dimension_numbers<[1], [0], [0], [1], [0, 0, 1, 1], [], []>} : vector<8x256xbf16>, vector<256x128xbf16>, vector<8x128xf32> -> vector<8x128xf32>
    %29 = vector.broadcast %25 : vector<1x128xf32> to vector<8x128xf32>
    %30 = arith.addf %28, %29 : vector<8x128xf32>
    %cst_20 = arith.constant 0.000000e+00 : f32
    %31 = vector.broadcast %cst_20 : f32 to vector<8x128xf32>
    %32 = arith.maximumf %30, %31 : vector<8x128xf32>
    %c0_21 = arith.constant 0 : index
    %c1920 = arith.constant 1920 : index
    %33 = vector.load %arg7[%c0_21, %c1920] : memref<1x2048xf32, #tpu.memory_space<vmem>>, vector<1x128xf32>
    %c0_22 = arith.constant 0 : index
    %c0_23 = arith.constant 0 : index
    %34 = vector.load %arg6[%c0_22, %c0_23] : memref<128x128xf32, #tpu.memory_space<vmem>>, vector<128x128xf32>
    %cst_24 = arith.constant dense<0.000000e+00> : vector<8x128xf32>
    %35 = tpu.matmul %32, %34, %cst_24 {dimension_numbers = #tpu.dot_dimension_numbers<[1], [0], [0], [1], [0, 0, 1, 1], [], []>} : vector<8x128xf32>, vector<128x128xf32>, vector<8x128xf32> -> vector<8x128xf32>
    %36 = vector.broadcast %33 : vector<1x128xf32> to vector<8x128xf32>
    %37 = arith.addf %35, %36 : vector<8x128xf32>
    %c0_25 = arith.constant 0 : index
    %c0_26 = arith.constant 0 : index
    %38 = vector.load %arg8[%c0_25, %c0_26] : memref<8x128xf32, #tpu.memory_space<vmem>>, vector<8x128xf32>
    tpu.vector_store %arg8[%c0_25, %c0_26], %37 {strides = array<i32>} : memref<8x128xf32, #tpu.memory_space<vmem>>, vector<8x128xf32>,
    return
  }
  func.func @transform_0(%arg0: i32) -> (i32, i32) {
    %c0_i32 = arith.constant 0 : i32
    %c0_i32_0 = arith.constant 0 : i32
    return %arg0, %c0_i32 : i32, i32
  }
  func.func @transform_1(%arg0: i32) -> (i32, i32) {
    %c0_i32 = arith.constant 0 : i32
    %c0_i32_0 = arith.constant 0 : i32
    %c0_i32_1 = arith.constant 0 : i32
    return %c0_i32, %c0_i32_0 : i32, i32
  }
  func.func @transform_2(%arg0: i32) -> (i32, i32) {
    %c0_i32 = arith.constant 0 : i32
    %c0_i32_0 = arith.constant 0 : i32
    %c0_i32_1 = arith.constant 0 : i32
    return %c0_i32, %c0_i32_0 : i32, i32
  }
  func.func @transform_3(%arg0: i32) -> (i32, i32) {
    %c0_i32 = arith.constant 0 : i32
    %c0_i32_0 = arith.constant 0 : i32
    %c0_i32_1 = arith.constant 0 : i32
    return %c0_i32, %c0_i32_0 : i32, i32
  }
  func.func @transform_4(%arg0: i32) -> (i32, i32) {
    %c0_i32 = arith.constant 0 : i32
    %c0_i32_0 = arith.constant 0 : i32
    %c0_i32_1 = arith.constant 0 : i32
    return %c0_i32, %c0_i32_0 : i32, i32
  }
  func.func @transform_5(%arg0: i32) -> (i32, i32) {
    %c0_i32 = arith.constant 0 : i32
    %c0_i32_0 = arith.constant 0 : i32
    %c0_i32_1 = arith.constant 0 : i32
    return %c0_i32, %c0_i32_0 : i32, i32
  }
  func.func @transform_6(%arg0: i32) -> (i32, i32) {
    %c0_i32 = arith.constant 0 : i32
    %c0_i32_0 = arith.constant 0 : i32
    %c0_i32_1 = arith.constant 0 : i32
    return %c0_i32, %c0_i32_0 : i32, i32
  }
  func.func @transform_7(%arg0: i32) -> (i32, i32) {
    %c0_i32 = arith.constant 0 : i32
    %c0_i32_0 = arith.constant 0 : i32
    return %arg0, %c0_i32 : i32, i32
  }
}

</mosaic_0001>

<llo_original>
// kernel: fcn_forward.1
$region0: #{fcn_forward.1}
  #allocation0 [shape = 'u32[]', space=smem, size = 0x4, offset = 0x4, fixed_abs, tag = 'smem constant byte address 0x4 - core index']
  #allocation1 [shape = 'u32[144,128]{1,0:T(1,128)}', space=vmem, size = 0x12000, scoped, tag = 'internal scratch']
  %s0 = inlined_call_operand.vmem [shape: f32[8,128], index: 0, kind: input, shape index: {}]
  %s1 = inlined_call_operand.hbm [shape: bf16[128,1024], index: 1, kind: input, shape index: {}]
  %s2 = inlined_call_operand.hbm [shape: bf16[1024,512], index: 2, kind: input, shape index: {}]
  %s3 = inlined_call_operand.hbm [shape: bf16[512,256], index: 3, kind: input, shape index: {}]
  %s4 = inlined_call_operand.hbm [shape: bf16[256,128], index: 4, kind: input, shape index: {}]
  %s5 = inlined_call_operand.hbm [shape: f32[128,128], index: 5, kind: input, shape index: {}]
  %s6 = inlined_call_operand.vmem [shape: f32[1,2048], index: 6, kind: input, shape index: {}]
  %s7 = inlined_call_operand.hbm [shape: f32[8,128], index: 7, kind: output, shape index: {}]
  %s8 = sld [smem:[#allocation0]]
  $region58: #{fcn_forward.1} parent=0
    _
  %s10 = ssub.s32 1, %s8
  %s11 = scalar_select 0, %s10, %s8
  $region1: #{fcn_forward.1} parent=0
    #allocation2 [shape = 'u8[262144]{0}', space=vmem, size = 0x40000, scoped, tag = 'input window, operand 1, single buffered']
    #allocation3 [shape = 's32[1]{0}', space=sflag, size = 0x4, scoped, tag = 'scoped memory for fcn_forward.1']
    #allocation4 [shape = 's32[1]{0}', space=sflag, size = 0x4, scoped, tag = 'scoped memory for fcn_forward.1']
    #allocation5 [shape = 'u8[1048576]{0}', space=vmem, size = 0x100000, scoped, tag = 'input window, operand 2, single buffered']
    #allocation6 [shape = 's32[1]{0}', space=sflag, size = 0x4, scoped, tag = 'scoped memory for fcn_forward.1']
    #allocation7 [shape = 'u8[262144]{0}', space=vmem, size = 0x40000, scoped, tag = 'input window, operand 3, single buffered']
    #allocation8 [shape = 'u8[65536]{0}', space=vmem, size = 0x10000, scoped, tag = 'input window, operand 4, single buffered']
    #allocation9 [shape = 's32[1]{0}', space=sflag, size = 0x4, scoped, tag = 'scoped memory for fcn_forward.1']
    #allocation10 [shape = 'u8[65536]{0}', space=vmem, size = 0x10000, scoped, tag = 'input window, operand 5, single buffered']
    #allocation11 [shape = 'u8[4096]{0}', space=vmem, size = 0x1000, scoped, tag = 'output window, operand 0, single buffered']
    %12 = vsyncpa [#allocation3], 0
    %13 = vsyncpa [#allocation6], 0
    %14 = vsyncpa [#allocation9], 0
    %15 = vsyncpa [#allocation4], 0
    // Predicated region
    $region2: #{fcn_forward.1} parent=1 // pred_check
      _
    $region3: #{fcn_forward.1} parent=1 // pred_check_branch
      %17 = sbr.rel (0) target = $region5
    $region4: #{fcn_forward.1} parent=1 // pred_region
      _
    $region5: #{fcn_forward.1} parent=1 // pred_fallthru
      _
    // Predicated region
    $region6: #{fcn_forward.1} parent=1 // pred_check
      _
    $region7: #{fcn_forward.1} parent=1 // pred_check_branch
      %19 = sbr.rel (0) target = $region9
    $region8: #{fcn_forward.1} parent=1 // pred_region
      %s21 = ssub.s32 8192, 8192
      %22 = vsyncadd [#allocation3], %s21
      %s23 = sshll.u32 [#allocation2], 4
      %s24 = int_to_ptr.vmem [resolvable:$true] %s23
      %29 = dma.hbm_to_vmem [thread:$0]  %s1, 8192, %s24, [#allocation3], 512, 512, 32
    $region9: #{fcn_forward.1} parent=1 // pred_fallthru
      _
    // Predicated region
    $region10: #{fcn_forward.1} parent=1 // pred_check
      _
    $region11: #{fcn_forward.1} parent=1 // pred_check_branch
      %31 = sbr.rel (0) target = $region13
    $region12: #{fcn_forward.1} parent=1 // pred_region
      %s33 = ssub.s32 32768, 32768
      %34 = vsyncadd [#allocation6], %s33
      %s35 = sshll.u32 [#allocation5], 4
      %s36 = int_to_ptr.vmem [resolvable:$true] %s35
      %41 = dma.hbm_to_vmem [thread:$0]  %s2, 32768, %s36, [#allocation6], 256, 256, 16
    $region13: #{fcn_forward.1} parent=1 // pred_fallthru
      _
    // Predicated region
    $region14: #{fcn_forward.1} parent=1 // pred_check
      _
    $region15: #{fcn_forward.1} parent=1 // pred_check_branch
      %43 = sbr.rel (0) target = $region17
    $region16: #{fcn_forward.1} parent=1 // pred_region
      %s45 = ssub.s32 8192, 8192
      %46 = vsyncadd [#allocation6], %s45
      %s47 = sshll.u32 [#allocation7], 4
      %s48 = int_to_ptr.vmem [resolvable:$true] %s47
      %53 = dma.hbm_to_vmem [thread:$0]  %s3, 8192, %s48, [#allocation6], 128, 128, 8
    $region17: #{fcn_forward.1} parent=1 // pred_fallthru
      _
    // Predicated region
    $region18: #{fcn_forward.1} parent=1 // pred_check
      _
    $region19: #{fcn_forward.1} parent=1 // pred_check_branch
      %55 = sbr.rel (0) target = $region21
    $region20: #{fcn_forward.1} parent=1 // pred_region
      %s57 = ssub.s32 2048, 2048
      %58 = vsyncadd [#allocation9], %s57
      %s59 = sshll.u32 [#allocation8], 4
      %s60 = int_to_ptr.vmem [resolvable:$true] %s59
      %65 = dma.hbm_to_vmem [thread:$0]  %s4, 2048, %s60, [#allocation9], 64, 64, 4
    $region21: #{fcn_forward.1} parent=1 // pred_fallthru
      _
    // Predicated region
    $region22: #{fcn_forward.1} parent=1 // pred_check
      _
    $region23: #{fcn_forward.1} parent=1 // pred_check_branch
      %67 = sbr.rel (0) target = $region25
    $region24: #{fcn_forward.1} parent=1 // pred_region
      %s69 = ssub.s32 2048, 2048
      %70 = vsyncadd [#allocation9], %s69
      %s71 = sshll.u32 [#allocation10], 4
      %s72 = int_to_ptr.vmem [resolvable:$true] %s71
      %77 = dma.hbm_to_vmem [thread:$0]  %s5, 2048, %s72, [#allocation9], 128, 128, 8
    $region25: #{fcn_forward.1} parent=1 // pred_fallthru
      _
    // Predicated region
    $region26: #{fcn_forward.1} parent=1 // pred_check
      _
    $region27: #{fcn_forward.1} parent=1 // pred_check_branch
      %79 = sbr.rel (0) target = $region29
    $region28: #{fcn_forward.1} parent=1 // pred_region
      _
    $region29: #{fcn_forward.1} parent=1 // pred_fallthru
      _
    // Predicated region
    $region30: #{fcn_forward.1} parent=1 // pred_check
      _
    $region31: #{fcn_forward.1} parent=1 // pred_check_branch
      %81 = sbr.rel (0) target = $region33
    $region32: #{fcn_forward.1} parent=1 // pred_region
      %82 = dma.done [#allocation3], 8192
    $region33: #{fcn_forward.1} parent=1 // pred_fallthru
      _
    // Predicated region
    $region34: #{fcn_forward.1} parent=1 // pred_check
      _
    $region35: #{fcn_forward.1} parent=1 // pred_check_branch
      %84 = sbr.rel (0) target = $region37
    $region36: #{fcn_forward.1} parent=1 // pred_region
      %85 = dma.done [#allocation6], 32768
    $region37: #{fcn_forward.1} parent=1 // pred_fallthru
      _
    // Predicated region
    $region38: #{fcn_forward.1} parent=1 // pred_check
      _
    $region39: #{fcn_forward.1} parent=1 // pred_check_branch
      %87 = sbr.rel (0) target = $region41
    $region40: #{fcn_forward.1} parent=1 // pred_region
      %88 = dma.done [#allocation6], 8192
    $region41: #{fcn_forward.1} parent=1 // pred_fallthru
      _
    // Predicated region
    $region42: #{fcn_forward.1} parent=1 // pred_check
      _
    $region43: #{fcn_forward.1} parent=1 // pred_check_branch
      %90 = sbr.rel (0) target = $region45
    $region44: #{fcn_forward.1} parent=1 // pred_region
      %91 = dma.done [#allocation9], 2048
    $region45: #{fcn_forward.1} parent=1 // pred_fallthru
      _
    // Predicated region
    $region46: #{fcn_forward.1} parent=1 // pred_check
      _
    $region47: #{fcn_forward.1} parent=1 // pred_check_branch
      %93 = sbr.rel (0) target = $region49
    $region48: #{fcn_forward.1} parent=1 // pred_region
      %94 = dma.done [#allocation9], 2048
    $region49: #{fcn_forward.1} parent=1 // pred_fallthru
      _
    %v96 = vld [vmem:[%s0] sm:$0xff]
    %v97 = vld [vmem:[%s6] sm:$0xff]
    %v98 = vpack.c.bf16 %v96, %v96
    %v99 = vld [vmem:[#allocation2] sm:$0xff]
    %v100 = vld [vmem:[#allocation2 + $0x8] sm:$0xff]
    %v101 = vld [vmem:[#allocation2 + $0x10] sm:$0xff]
    %v102 = vld [vmem:[#allocation2 + $0x18] sm:$0xff]
    %v103 = vld [vmem:[#allocation2 + $0x20] sm:$0xff]
    %v104 = vld [vmem:[#allocation2 + $0x28] sm:$0xff]
    %v105 = vld [vmem:[#allocation2 + $0x30] sm:$0xff]
    %v106 = vld [vmem:[#allocation2 + $0x38] sm:$0xff]
    %v107 = vld [vmem:[#allocation2 + $0x40] sm:$0xff]
    %v108 = vld [vmem:[#allocation2 + $0x48] sm:$0xff]
    %v109 = vld [vmem:[#allocation2 + $0x50] sm:$0xff]
    %v110 = vld [vmem:[#allocation2 + $0x58] sm:$0xff]
    %v111 = vld [vmem:[#allocation2 + $0x60] sm:$0xff]
    %v112 = vld [vmem:[#allocation2 + $0x68] sm:$0xff]
    %v113 = vld [vmem:[#allocation2 + $0x70] sm:$0xff]
    %v114 = vld [vmem:[#allocation2 + $0x78] sm:$0xff]
    %v115 = vld [vmem:[#allocation2 + $0x80] sm:$0xff]
    %v116 = vld [vmem:[#allocation2 + $0x88] sm:$0xff]
    %v117 = vld [vmem:[#allocation2 + $0x90] sm:$0xff]
    %v118 = vld [vmem:[#allocation2 + $0x98] sm:$0xff]
    %v119 = vld [vmem:[#allocation2 + $0xa0] sm:$0xff]
    %v120 = vld [vmem:[#allocation2 + $0xa8] sm:$0xff]
    %v121 = vld [vmem:[#allocation2 + $0xb0] sm:$0xff]
    %v122 = vld [vmem:[#allocation2 + $0xb8] sm:$0xff]
    %v123 = vld [vmem:[#allocation2 + $0xc0] sm:$0xff]
    %v124 = vld [vmem:[#allocation2 + $0xc8] sm:$0xff]
    %v125 = vld [vmem:[#allocation2 + $0xd0] sm:$0xff]
    %v126 = vld [vmem:[#allocation2 + $0xd8] sm:$0xff]
    %v127 = vld [vmem:[#allocation2 + $0xe0] sm:$0xff]
    %v128 = vld [vmem:[#allocation2 + $0xe8] sm:$0xff]
    %v129 = vld [vmem:[#allocation2 + $0xf0] sm:$0xff]
    %v130 = vld [vmem:[#allocation2 + $0xf8] sm:$0xff]
    %v131 = vld [vmem:[#allocation2 + $0x100] sm:$0xff]
    %v132 = vld [vmem:[#allocation2 + $0x108] sm:$0xff]
    %v133 = vld [vmem:[#allocation2 + $0x110] sm:$0xff]
    %v134 = vld [vmem:[#allocation2 + $0x118] sm:$0xff]
    %v135 = vld [vmem:[#allocation2 + $0x120] sm:$0xff]
    %v136 = vld [vmem:[#allocation2 + $0x128] sm:$0xff]
    %v137 = vld [vmem:[#allocation2 + $0x130] sm:$0xff]
    %v138 = vld [vmem:[#allocation2 + $0x138] sm:$0xff]
    %v139 = vld [vmem:[#allocation2 + $0x140] sm:$0xff]
    %v140 = vld [vmem:[#allocation2 + $0x148] sm:$0xff]
    %v141 = vld [vmem:[#allocation2 + $0x150] sm:$0xff]
    %v142 = vld [vmem:[#allocation2 + $0x158] sm:$0xff]
    %v143 = vld [vmem:[#allocation2 + $0x160] sm:$0xff]
    %v144 = vld [vmem:[#allocation2 + $0x168] sm:$0xff]
    %v145 = vld [vmem:[#allocation2 + $0x170] sm:$0xff]
    %v146 = vld [vmem:[#allocation2 + $0x178] sm:$0xff]
    %v147 = vld [vmem:[#allocation2 + $0x180] sm:$0xff]
    %v148 = vld [vmem:[#allocation2 + $0x188] sm:$0xff]
    %v149 = vld [vmem:[#allocation2 + $0x190] sm:$0xff]
    %v150 = vld [vmem:[#allocation2 + $0x198] sm:$0xff]
    %v151 = vld [vmem:[#allocation2 + $0x1a0] sm:$0xff]
    %v152 = vld [vmem:[#allocation2 + $0x1a8] sm:$0xff]
    %v153 = vld [vmem:[#allocation2 + $0x1b0] sm:$0xff]
    %v154 = vld [vmem:[#allocation2 + $0x1b8] sm:$0xff]
    %v155 = vld [vmem:[#allocation2 + $0x1c0] sm:$0xff]
    %v156 = vld [vmem:[#allocation2 + $0x1c8] sm:$0xff]
    %v157 = vld [vmem:[#allocation2 + $0x1d0] sm:$0xff]
    %v158 = vld [vmem:[#allocation2 + $0x1d8] sm:$0xff]
    %v159 = vld [vmem:[#allocation2 + $0x1e0] sm:$0xff]
    %v160 = vld [vmem:[#allocation2 + $0x1e8] sm:$0xff]
    %v161 = vld [vmem:[#allocation2 + $0x1f0] sm:$0xff]
    %v162 = vld [vmem:[#allocation2 + $0x1f8] sm:$0xff]
    %v164 = vlaneseq
    %v165 = vshrl.u32 %v164, 7
    %v166 = vsub.s32 0, %v165
    %v167 = vrot.slane %v97, %v166
    %v168 = vlaneseq
    %v169 = vshrl.u32 %v168, 7
    %v170 = vsub.s32 1, %v169
    %v171 = vrot.slane %v97, %v170
    %v172 = vlaneseq
    %v173 = vshrl.u32 %v172, 7
    %v174 = vsub.s32 2, %v173
    %v175 = vrot.slane %v97, %v174
    %v176 = vlaneseq
    %v177 = vshrl.u32 %v176, 7
    %v178 = vsub.s32 3, %v177
    %v179 = vrot.slane %v97, %v178
    %v180 = vlaneseq
    %v181 = vshrl.u32 %v180, 7
    %v182 = vsub.s32 4, %v181
    %v183 = vrot.slane %v97, %v182
    %v184 = vlaneseq
    %v185 = vshrl.u32 %v184, 7
    %v186 = vsub.s32 5, %v185
    %v187 = vrot.slane %v97, %v186
    %v188 = vlaneseq
    %v189 = vshrl.u32 %v188, 7
    %v190 = vsub.s32 6, %v189
    %v191 = vrot.slane %v97, %v190
    %v192 = vlaneseq
    %v193 = vshrl.u32 %v192, 7
    %v194 = vsub.s32 7, %v193
    %v195 = vrot.slane %v97, %v194
    %v268 = vunpack.c.l.b16 %v99
    %v269 = vunpack.c.h.b16 %v99
    %v270 = vunpack.c.l.b16 %v100
    %v271 = vunpack.c.h.b16 %v100
    %v272 = vunpack.c.l.b16 %v101
    %v273 = vunpack.c.h.b16 %v101
    %v274 = vunpack.c.l.b16 %v102
    %v275 = vunpack.c.h.b16 %v102
    %v276 = vunpack.c.l.b16 %v103
    %v277 = vunpack.c.h.b16 %v103
    %v278 = vunpack.c.l.b16 %v104
    %v279 = vunpack.c.h.b16 %v104
    %v280 = vunpack.c.l.b16 %v105
    %v281 = vunpack.c.h.b16 %v105
    %v282 = vunpack.c.l.b16 %v106
    %v283 = vunpack.c.h.b16 %v106
    %v284 = vunpack.c.l.b16 %v107
    %v285 = vunpack.c.h.b16 %v107
    %v286 = vunpack.c.l.b16 %v108
    %v287 = vunpack.c.h.b16 %v108
    %v288 = vunpack.c.l.b16 %v109
    %v289 = vunpack.c.h.b16 %v109
    %v290 = vunpack.c.l.b16 %v110
    %v291 = vunpack.c.h.b16 %v110
    %v292 = vunpack.c.l.b16 %v111
    %v293 = vunpack.c.h.b16 %v111
    %v294 = vunpack.c.l.b16 %v112
    %v295 = vunpack.c.h.b16 %v112
    %v296 = vunpack.c.l.b16 %v113
    %v297 = vunpack.c.h.b16 %v113
    %v298 = vunpack.c.l.b16 %v114
    %v299 = vunpack.c.h.b16 %v114
    %v300 = vunpack.c.l.b16 %v115
    %v301 = vunpack.c.h.b16 %v115
    %v302 = vunpack.c.l.b16 %v116
    %v303 = vunpack.c.h.b16 %v116
    %v304 = vunpack.c.l.b16 %v117
    %v305 = vunpack.c.h.b16 %v117
    %v306 = vunpack.c.l.b16 %v118
    %v307 = vunpack.c.h.b16 %v118
    %v308 = vunpack.c.l.b16 %v119
    %v309 = vunpack.c.h.b16 %v119
    %v310 = vunpack.c.l.b16 %v120
    %v311 = vunpack.c.h.b16 %v120
    %v312 = vunpack.c.l.b16 %v121
    %v313 = vunpack.c.h.b16 %v121
    %v314 = vunpack.c.l.b16 %v122
    %v315 = vunpack.c.h.b16 %v122
    %v316 = vunpack.c.l.b16 %v123
    %v317 = vunpack.c.h.b16 %v123
    %v318 = vunpack.c.l.b16 %v124
    %v319 = vunpack.c.h.b16 %v124
    %v320 = vunpack.c.l.b16 %v125
    %v321 = vunpack.c.h.b16 %v125
    %v322 = vunpack.c.l.b16 %v126
    %v323 = vunpack.c.h.b16 %v126
    %v324 = vunpack.c.l.b16 %v127
    %v325 = vunpack.c.h.b16 %v127
    %v326 = vunpack.c.l.b16 %v128
    %v327 = vunpack.c.h.b16 %v128
    %v328 = vunpack.c.l.b16 %v129
    %v329 = vunpack.c.h.b16 %v129
    %v330 = vunpack.c.l.b16 %v130
    %v331 = vunpack.c.h.b16 %v130
    %v332 = vunpack.c.l.b16 %v131
    %v333 = vunpack.c.h.b16 %v131
    %v334 = vunpack.c.l.b16 %v132
    %v335 = vunpack.c.h.b16 %v132
    %v336 = vunpack.c.l.b16 %v133
    %v337 = vunpack.c.h.b16 %v133
    %v338 = vunpack.c.l.b16 %v134
    %v339 = vunpack.c.h.b16 %v134
    %v340 = vunpack.c.l.b16 %v135
    %v341 = vunpack.c.h.b16 %v135
    %v342 = vunpack.c.l.b16 %v136
    %v343 = vunpack.c.h.b16 %v136
    %v344 = vunpack.c.l.b16 %v137
    %v345 = vunpack.c.h.b16 %v137
    %v346 = vunpack.c.l.b16 %v138
    %v347 = vunpack.c.h.b16 %v138
    %v348 = vunpack.c.l.b16 %v139
    %v349 = vunpack.c.h.b16 %v139
    %v350 = vunpack.c.l.b16 %v140
    %v351 = vunpack.c.h.b16 %v140
    %v352 = vunpack.c.l.b16 %v141
    %v353 = vunpack.c.h.b16 %v141
    %v354 = vunpack.c.l.b16 %v142
    %v355 = vunpack.c.h.b16 %v142
    %v356 = vunpack.c.l.b16 %v143
    %v357 = vunpack.c.h.b16 %v143
    %v358 = vunpack.c.l.b16 %v144
    %v359 = vunpack.c.h.b16 %v144
    %v360 = vunpack.c.l.b16 %v145
    %v361 = vunpack.c.h.b16 %v145
    %v362 = vunpack.c.l.b16 %v146
    %v363 = vunpack.c.h.b16 %v146
    %v364 = vunpack.c.l.b16 %v147
    %v365 = vunpack.c.h.b16 %v147
    %v366 = vunpack.c.l.b16 %v148
    %v367 = vunpack.c.h.b16 %v148
    %v368 = vunpack.c.l.b16 %v149
    %v369 = vunpack.c.h.b16 %v149
    %v370 = vunpack.c.l.b16 %v150
    %v371 = vunpack.c.h.b16 %v150
    %v372 = vunpack.c.l.b16 %v151
    %v373 = vunpack.c.h.b16 %v151
    %v374 = vunpack.c.l.b16 %v152
    %v375 = vunpack.c.h.b16 %v152
    %v376 = vunpack.c.l.b16 %v153
    %v377 = vunpack.c.h.b16 %v153
    %v378 = vunpack.c.l.b16 %v154
    %v379 = vunpack.c.h.b16 %v154
    %v380 = vunpack.c.l.b16 %v155
    %v381 = vunpack.c.h.b16 %v155
    %v382 = vunpack.c.l.b16 %v156
    %v383 = vunpack.c.h.b16 %v156
    %v384 = vunpack.c.l.b16 %v157
    %v385 = vunpack.c.h.b16 %v157
    %v386 = vunpack.c.l.b16 %v158
    %v387 = vunpack.c.h.b16 %v158
    %v388 = vunpack.c.l.b16 %v159
    %v389 = vunpack.c.h.b16 %v159
    %v390 = vunpack.c.l.b16 %v160
    %v391 = vunpack.c.h.b16 %v160
    %v392 = vunpack.c.l.b16 %v161
    %v393 = vunpack.c.h.b16 %v161
    %v394 = vunpack.c.l.b16 %v162
    %v395 = vunpack.c.h.b16 %v162
    %v396 = vpack.c.b16 %v276, %v268
    %v397 = vpack.c.b16 %v277, %v269
    %v398 = vpack.c.b16 %v278, %v270
    %v399 = vpack.c.b16 %v279, %v271
    %v400 = vpack.c.b16 %v280, %v272
    %v401 = vpack.c.b16 %v281, %v273
    %v402 = vpack.c.b16 %v282, %v274
    %v403 = vpack.c.b16 %v283, %v275
    %v404 = vpack.c.b16 %v292, %v284
    %v405 = vpack.c.b16 %v293, %v285
    %v406 = vpack.c.b16 %v294, %v286
    %v407 = vpack.c.b16 %v295, %v287
    %v408 = vpack.c.b16 %v296, %v288
    %v409 = vpack.c.b16 %v297, %v289
    %v410 = vpack.c.b16 %v298, %v290
    %v411 = vpack.c.b16 %v299, %v291
    %v412 = vpack.c.b16 %v308, %v300
    %v413 = vpack.c.b16 %v309, %v301
    %v414 = vpack.c.b16 %v310, %v302
    %v415 = vpack.c.b16 %v311, %v303
    %v416 = vpack.c.b16 %v312, %v304
    %v417 = vpack.c.b16 %v313, %v305
    %v418 = vpack.c.b16 %v314, %v306
    %v419 = vpack.c.b16 %v315, %v307
    %v420 = vpack.c.b16 %v324, %v316
    %v421 = vpack.c.b16 %v325, %v317
    %v422 = vpack.c.b16 %v326, %v318
    %v423 = vpack.c.b16 %v327, %v319
    %v424 = vpack.c.b16 %v328, %v320
    %v425 = vpack.c.b16 %v329, %v321
    %v426 = vpack.c.b16 %v330, %v322
    %v427 = vpack.c.b16 %v331, %v323
    %v428 = vpack.c.b16 %v340, %v332
    %v429 = vpack.c.b16 %v341, %v333
    %v430 = vpack.c.b16 %v342, %v334
    %v431 = vpack.c.b16 %v343, %v335
    %v432 = vpack.c.b16 %v344, %v336
    %v433 = vpack.c.b16 %v345, %v337
    %v434 = vpack.c.b16 %v346, %v338
    %v435 = vpack.c.b16 %v347, %v339
    %v436 = vpack.c.b16 %v356, %v348
    %v437 = vpack.c.b16 %v357, %v349
    %v438 = vpack.c.b16 %v358, %v350
    %v439 = vpack.c.b16 %v359, %v351
    %v440 = vpack.c.b16 %v360, %v352
    %v441 = vpack.c.b16 %v361, %v353
    %v442 = vpack.c.b16 %v362, %v354
    %v443 = vpack.c.b16 %v363, %v355
    %v444 = vpack.c.b16 %v372, %v364
    %v445 = vpack.c.b16 %v373, %v365
    %v446 = vpack.c.b16 %v374, %v366
    %v447 = vpack.c.b16 %v375, %v367
    %v448 = vpack.c.b16 %v376, %v368
    %v449 = vpack.c.b16 %v377, %v369
    %v450 = vpack.c.b16 %v378, %v370
    %v451 = vpack.c.b16 %v379, %v371
    %v452 = vpack.c.b16 %v388, %v380
    %v453 = vpack.c.b16 %v389, %v381
    %v454 = vpack.c.b16 %v390, %v382
    %v455 = vpack.c.b16 %v391, %v383
    %v456 = vpack.c.b16 %v392, %v384
    %v457 = vpack.c.b16 %v393, %v385
    %v458 = vpack.c.b16 %v394, %v386
    %v459 = vpack.c.b16 %v395, %v387
    %524 = vmatprep.subr.bf16.mxu0 %v397
    %525 = vmatpush1.bf16.msra.mxu0 %v396
    %526 = vmatprep.subr.bf16.mxu0 %v405
    %527 = vmatpush1.bf16.msra.mxu0 %v404
    %528 = vmatprep.subr.bf16.mxu0 %v413
    %529 = vmatpush1.bf16.msra.mxu0 %v412
    %530 = vmatprep.subr.bf16.mxu0 %v421
    %531 = vmatpush1.bf16.msra.mxu0 %v420
    %532 = vmatprep.subr.bf16.mxu0 %v429
    %533 = vmatpush1.bf16.msra.mxu0 %v428
    %534 = vmatprep.subr.bf16.mxu0 %v437
    %535 = vmatpush1.bf16.msra.mxu0 %v436
    %536 = vmatprep.subr.bf16.mxu0 %v445
    %537 = vmatpush1.bf16.msra.mxu0 %v444
    %538 = vmatprep.subr.bf16.mxu0 %v453
    %539 = vmatpush1.bf16.msra.mxu0 %v452
    %540 = vmatprep.subr.bf16.mxu0 0
    %541 = vmatpush1.bf16.msra.mxu0 0
    %542 = vmatprep.subr.bf16.mxu0 0
    %543 = vmatpush1.bf16.msra.mxu0 0
    %544 = vmatprep.subr.bf16.mxu0 0
    %545 = vmatpush1.bf16.msra.mxu0 0
    %546 = vmatprep.subr.bf16.mxu0 0
    %547 = vmatpush1.bf16.msra.mxu0 0
    %548 = vmatprep.subr.bf16.mxu0 0
    %549 = vmatpush1.bf16.msra.mxu0 0
    %550 = vmatprep.subr.bf16.mxu0 0
    %551 = vmatpush1.bf16.msra.mxu0 0
    %552 = vmatprep.subr.bf16.mxu0 0
    %553 = vmatpush1.bf16.msra.mxu0 0
    %554 = vmatprep.subr.bf16.mxu0 0
    %555 = vmatpush1.bf16.msra.mxu0 0
    %556 = vmatprep.mubr.bf16.mxu0 0
    %557 = vmatmul.mubr.bf16.gmra.mrb[0].mxu0 %v98
    %v558 = vpop.f32.mrb[0].mxu0
    %v559 = vadd.f32 %v167, %v558
    %v560 = vpop.f32.mrb[0].mxu0
    %v561 = vadd.f32 %v171, %v560
    %v562 = vpop.f32.mrb[0].mxu0
    %v563 = vpop.f32.mrb[0].mxu0
    %564 = vdwg.mxu0
    %565 = vmatprep.subr.bf16.mxu0 %v399
    %566 = vmatpush1.bf16.msra.mxu0 %v398
    %567 = vmatprep.subr.bf16.mxu0 %v407
    %568 = vmatpush1.bf16.msra.mxu0 %v406
    %569 = vmatprep.subr.bf16.mxu0 %v415
    %570 = vmatpush1.bf16.msra.mxu0 %v414
    %571 = vmatprep.subr.bf16.mxu0 %v423
    %572 = vmatpush1.bf16.msra.mxu0 %v422
    %573 = vmatprep.subr.bf16.mxu0 %v431
    %574 = vmatpush1.bf16.msra.mxu0 %v430
    %575 = vmatprep.subr.bf16.mxu0 %v439
    %576 = vmatpush1.bf16.msra.mxu0 %v438
    %577 = vmatprep.subr.bf16.mxu0 %v447
    %578 = vmatpush1.bf16.msra.mxu0 %v446
    %579 = vmatprep.subr.bf16.mxu0 %v455
    %580 = vmatpush1.bf16.msra.mxu0 %v454
    %581 = vmatprep.subr.bf16.mxu0 0
    %582 = vmatpush1.bf16.msra.mxu0 0
    %583 = vmatprep.subr.bf16.mxu0 0
    %584 = vmatpush1.bf16.msra.mxu0 0
    %585 = vmatprep.subr.bf16.mxu0 0
    %586 = vmatpush1.bf16.msra.mxu0 0
    %587 = vmatprep.subr.bf16.mxu0 0
    %588 = vmatpush1.bf16.msra.mxu0 0
    %589 = vmatprep.subr.bf16.mxu0 0
    %590 = vmatpush1.bf16.msra.mxu0 0
    %591 = vmatprep.subr.bf16.mxu0 0
    %592 = vmatpush1.bf16.msra.mxu0 0
    %593 = vmatprep.subr.bf16.mxu0 0
    %594 = vmatpush1.bf16.msra.mxu0 0
    %595 = vmatprep.subr.bf16.mxu0 0
    %596 = vmatpush1.bf16.msra.mxu0 0
    %597 = vmatprep.mubr.bf16.mxu0 0
    %598 = vmatmul.mubr.bf16.gmra.mrb[0].mxu0 %v98
    %v599 = vpop.f32.mrb[0].mxu0
    %v600 = vadd.f32 %v175, %v599
    %v601 = vpop.f32.mrb[0].mxu0
    %v602 = vadd.f32 %v179, %v601
    %v603 = vpop.f32.mrb[0].mxu0
    %v604 = vpop.f32.mrb[0].mxu0
    %605 = vdwg.mxu0
    %606 = vmatprep.subr.bf16.mxu0 %v401
    %607 = vmatpush1.bf16.msra.mxu0 %v400
    %608 = vmatprep.subr.bf16.mxu0 %v409
    %609 = vmatpush1.bf16.msra.mxu0 %v408
    %610 = vmatprep.subr.bf16.mxu0 %v417
    %611 = vmatpush1.bf16.msra.mxu0 %v416
    %612 = vmatprep.subr.bf16.mxu0 %v425
    %613 = vmatpush1.bf16.msra.mxu0 %v424
    %614 = vmatprep.subr.bf16.mxu0 %v433
    %615 = vmatpush1.bf16.msra.mxu0 %v432
    %616 = vmatprep.subr.bf16.mxu0 %v441
    %617 = vmatpush1.bf16.msra.mxu0 %v440
    %618 = vmatprep.subr.bf16.mxu0 %v449
    %619 = vmatpush1.bf16.msra.mxu0 %v448
    %620 = vmatprep.subr.bf16.mxu0 %v457
    %621 = vmatpush1.bf16.msra.mxu0 %v456
    %622 = vmatprep.subr.bf16.mxu0 0
    %623 = vmatpush1.bf16.msra.mxu0 0
    %624 = vmatprep.subr.bf16.mxu0 0
    %625 = vmatpush1.bf16.msra.mxu0 0
    %626 = vmatprep.subr.bf16.mxu0 0
    %627 = vmatpush1.bf16.msra.mxu0 0
    %628 = vmatprep.subr.bf16.mxu0 0
    %629 = vmatpush1.bf16.msra.mxu0 0
    %630 = vmatprep.subr.bf16.mxu0 0
    %631 = vmatpush1.bf16.msra.mxu0 0
    %632 = vmatprep.subr.bf16.mxu0 0
    %633 = vmatpush1.bf16.msra.mxu0 0
    %634 = vmatprep.subr.bf16.mxu0 0
    %635 = vmatpush1.bf16.msra.mxu0 0
    %636 = vmatprep.subr.bf16.mxu0 0
    %637 = vmatpush1.bf16.msra.mxu0 0
    %638 = vmatprep.mubr.bf16.mxu0 0
    %639 = vmatmul.mubr.bf16.gmra.mrb[0].mxu0 %v98
    %v640 = vpop.f32.mrb[0].mxu0
    %v641 = vadd.f32 %v183, %v640
    %v642 = vpop.f32.mrb[0].mxu0
    %v643 = vadd.f32 %v187, %v642
    %v644 = vpop.f32.mrb[0].mxu0
    %v645 = vpop.f32.mrb[0].mxu0
    %646 = vdwg.mxu0
    %647 = vmatprep.subr.bf16.mxu0 %v403
    %648 = vmatpush1.bf16.msra.mxu0 %v402
    %649 = vmatprep.subr.bf16.mxu0 %v411
    %650 = vmatpush1.bf16.msra.mxu0 %v410
    %651 = vmatprep.subr.bf16.mxu0 %v419
    %652 = vmatpush1.bf16.msra.mxu0 %v418
    %653 = vmatprep.subr.bf16.mxu0 %v427
    %654 = vmatpush1.bf16.msra.mxu0 %v426
    %655 = vmatprep.subr.bf16.mxu0 %v435
    %656 = vmatpush1.bf16.msra.mxu0 %v434
    %657 = vmatprep.subr.bf16.mxu0 %v443
    %658 = vmatpush1.bf16.msra.mxu0 %v442
    %659 = vmatprep.subr.bf16.mxu0 %v451
    %660 = vmatpush1.bf16.msra.mxu0 %v450
    %661 = vmatprep.subr.bf16.mxu0 %v459
    %662 = vmatpush1.bf16.msra.mxu0 %v458
    %663 = vmatprep.subr.bf16.mxu0 0
    %664 = vmatpush1.bf16.msra.mxu0 0
    %665 = vmatprep.subr.bf16.mxu0 0
    %666 = vmatpush1.bf16.msra.mxu0 0
    %667 = vmatprep.subr.bf16.mxu0 0
    %668 = vmatpush1.bf16.msra.mxu0 0
    %669 = vmatprep.subr.bf16.mxu0 0
    %670 = vmatpush1.bf16.msra.mxu0 0
    %671 = vmatprep.subr.bf16.mxu0 0
    %672 = vmatpush1.bf16.msra.mxu0 0
    %673 = vmatprep.subr.bf16.mxu0 0
    %674 = vmatpush1.bf16.msra.mxu0 0
    %675 = vmatprep.subr.bf16.mxu0 0
    %676 = vmatpush1.bf16.msra.mxu0 0
    %677 = vmatprep.subr.bf16.mxu0 0
    %678 = vmatpush1.bf16.msra.mxu0 0
    %679 = vmatprep.mubr.bf16.mxu0 0
    %680 = vmatmul.mubr.bf16.gmra.mrb[0].mxu0 %v98
    %v681 = vpop.f32.mrb[0].mxu0
    %v682 = vadd.f32 %v191, %v681
    %v683 = vpop.f32.mrb[0].mxu0
    %v684 = vadd.f32 %v195, %v683
    %v685 = vpop.f32.mrb[0].mxu0
    %v686 = vpop.f32.mrb[0].mxu0
    %687 = vdwg.mxu0
    %v688 = vmax.f32 %v559, 0.0
    %v689 = vmax.f32 %v561, 0.0
    %v690 = vmax.f32 %v600, 0.0
    %v691 = vmax.f32 %v602, 0.0
    %v692 = vmax.f32 %v641, 0.0
    %v693 = vmax.f32 %v643, 0.0
    %v694 = vmax.f32 %v682, 0.0
    %v695 = vmax.f32 %v684, 0.0
    %v696 = vld [vmem:[%s6 + $0x8] sm:$0xf]
    %v697 = vpack.c.bf16 %v688, %v688
    %v698 = vpack.c.bf16 %v689, %v689
    %v699 = vpack.c.bf16 %v690, %v690
    %v700 = vpack.c.bf16 %v691, %v691
    %v701 = vpack.c.bf16 %v692, %v692
    %v702 = vpack.c.bf16 %v693, %v693
    %v703 = vpack.c.bf16 %v694, %v694
    %v704 = vpack.c.bf16 %v695, %v695
    %v705 = vld [vmem:[#allocation5] sm:$0xff]
    %v706 = vld [vmem:[#allocation5 + $0x8] sm:$0xff]
    %v707 = vld [vmem:[#allocation5 + $0x10] sm:$0xff]
    %v708 = vld [vmem:[#allocation5 + $0x18] sm:$0xff]
    %v709 = vld [vmem:[#allocation5 + $0x20] sm:$0xff]
    %v710 = vld [vmem:[#allocation5 + $0x28] sm:$0xff]
    %v711 = vld [vmem:[#allocation5 + $0x30] sm:$0xff]
    %v712 = vld [vmem:[#allocation5 + $0x38] sm:$0xff]
    %v713 = vld [vmem:[#allocation5 + $0x40] sm:$0xff]
    %v714 = vld [vmem:[#allocation5 + $0x48] sm:$0xff]
    %v715 = vld [vmem:[#allocation5 + $0x50] sm:$0xff]
    %v716 = vld [vmem:[#allocation5 + $0x58] sm:$0xff]
    %v717 = vld [vmem:[#allocation5 + $0x60] sm:$0xff]
    %v718 = vld [vmem:[#allocation5 + $0x68] sm:$0xff]
    %v719 = vld [vmem:[#allocation5 + $0x70] sm:$0xff]
    %v720 = vld [vmem:[#allocation5 + $0x78] sm:$0xff]
    %v721 = vld [vmem:[#allocation5 + $0x80] sm:$0xff]
    %v722 = vld [vmem:[#allocation5 + $0x88] sm:$0xff]
    %v723 = vld [vmem:[#allocation5 + $0x90] sm:$0xff]
    %v724 = vld [vmem:[#allocation5 + $0x98] sm:$0xff]
    %v725 = vld [vmem:[#allocation5 + $0xa0] sm:$0xff]
    %v726 = vld [vmem:[#allocation5 + $0xa8] sm:$0xff]
    %v727 = vld [vmem:[#allocation5 + $0xb0] sm:$0xff]
    %v728 = vld [vmem:[#allocation5 + $0xb8] sm:$0xff]
    %v729 = vld [vmem:[#allocation5 + $0xc0] sm:$0xff]
    %v730 = vld [vmem:[#allocation5 + $0xc8] sm:$0xff]
    %v731 = vld [vmem:[#allocation5 + $0xd0] sm:$0xff]
    %v732 = vld [vmem:[#allocation5 + $0xd8] sm:$0xff]
    %v733 = vld [vmem:[#allocation5 + $0xe0] sm:$0xff]
    %v734 = vld [vmem:[#allocation5 + $0xe8] sm:$0xff]
    %v735 = vld [vmem:[#allocation5 + $0xf0] sm:$0xff]
    %v736 = vld [vmem:[#allocation5 + $0xf8] sm:$0xff]
    %v737 = vld [vmem:[#allocation5 + $0x100] sm:$0xff]
    %v738 = vld [vmem:[#allocation5 + $0x108] sm:$0xff]
    %v739 = vld [vmem:[#allocation5 + $0x110] sm:$0xff]
    %v740 = vld [vmem:[#allocation5 + $0x118] sm:$0xff]
    %v741 = vld [vmem:[#allocation5 + $0x120] sm:$0xff]
    %v742 = vld [vmem:[#allocation5 + $0x128] sm:$0xff]
    %v743 = vld [vmem:[#allocation5 + $0x130] sm:$0xff]
    %v744 = vld [vmem:[#allocation5 + $0x138] sm:$0xff]
    %v745 = vld [vmem:[#allocation5 + $0x140] sm:$0xff]
    %v746 = vld [vmem:[#allocation5 + $0x148] sm:$0xff]
    %v747 = vld [vmem:[#allocation5 + $0x150] sm:$0xff]
    %v748 = vld [vmem:[#allocation5 + $0x158] sm:$0xff]
    %v749 = vld [vmem:[#allocation5 + $0x160] sm:$0xff]
    %v750 = vld [vmem:[#allocation5 + $0x168] sm:$0xff]
    %v751 = vld [vmem:[#allocation5 + $0x170] sm:$0xff]
    %v752 = vld [vmem:[#allocation5 + $0x178] sm:$0xff]
    %v753 = vld [vmem:[#allocation5 + $0x180] sm:$0xff]
    %v754 = vld [vmem:[#allocation5 + $0x188] sm:$0xff]
    %v755 = vld [vmem:[#allocation5 + $0x190] sm:$0xff]
    %v756 = vld [vmem:[#allocation5 + $0x198] sm:$0xff]
    %v757 = vld [vmem:[#allocation5 + $0x1a0] sm:$0xff]
    %v758 = vld [vmem:[#allocation5 + $0x1a8] sm:$0xff]
    %v759 = vld [vmem:[#allocation5 + $0x1b0] sm:$0xff]
    %v760 = vld [vmem:[#allocation5 + $0x1b8] sm:$0xff]
    %v761 = vld [vmem:[#allocation5 + $0x1c0] sm:$0xff]
    %v762 = vld [vmem:[#allocation5 + $0x1c8] sm:$0xff]
    %v763 = vld [vmem:[#allocation5 + $0x1d0] sm:$0xff]
    %v764 = vld [vmem:[#allocation5 + $0x1d8] sm:$0xff]
    %v765 = vld [vmem:[#allocation5 + $0x1e0] sm:$0xff]
    %v766 = vld [vmem:[#allocation5 + $0x1e8] sm:$0xff]
    %v767 = vld [vmem:[#allocation5 + $0x1f0] sm:$0xff]
    %v768 = vld [vmem:[#allocation5 + $0x1f8] sm:$0xff]
    %v769 = vld [vmem:[#allocation5 + $0x200] sm:$0xff]
    %v770 = vld [vmem:[#allocation5 + $0x208] sm:$0xff]
    %v771 = vld [vmem:[#allocation5 + $0x210] sm:$0xff]
    %v772 = vld [vmem:[#allocation5 + $0x218] sm:$0xff]
    %v773 = vld [vmem:[#allocation5 + $0x220] sm:$0xff]
    %v774 = vld [vmem:[#allocation5 + $0x228] sm:$0xff]
    %v775 = vld [vmem:[#allocation5 + $0x230] sm:$0xff]
    %v776 = vld [vmem:[#allocation5 + $0x238] sm:$0xff]
    %v777 = vld [vmem:[#allocation5 + $0x240] sm:$0xff]
    %v778 = vld [vmem:[#allocation5 + $0x248] sm:$0xff]
    %v779 = vld [vmem:[#allocation5 + $0x250] sm:$0xff]
    %v780 = vld [vmem:[#allocation5 + $0x258] sm:$0xff]
    %v781 = vld [vmem:[#allocation5 + $0x260] sm:$0xff]
    %v782 = vld [vmem:[#allocation5 + $0x268] sm:$0xff]
    %v783 = vld [vmem:[#allocation5 + $0x270] sm:$0xff]
    %v784 = vld [vmem:[#allocation5 + $0x278] sm:$0xff]
    %v785 = vld [vmem:[#allocation5 + $0x280] sm:$0xff]
    %v786 = vld [vmem:[#allocation5 + $0x288] sm:$0xff]
    %v787 = vld [vmem:[#allocation5 + $0x290] sm:$0xff]
    %v788 = vld [vmem:[#allocation5 + $0x298] sm:$0xff]
    %v789 = vld [vmem:[#allocation5 + $0x2a0] sm:$0xff]
    %v790 = vld [vmem:[#allocation5 + $0x2a8] sm:$0xff]
    %v791 = vld [vmem:[#allocation5 + $0x2b0] sm:$0xff]
    %v792 = vld [vmem:[#allocation5 + $0x2b8] sm:$0xff]
    %v793 = vld [vmem:[#allocation5 + $0x2c0] sm:$0xff]
    %v794 = vld [vmem:[#allocation5 + $0x2c8] sm:$0xff]
    %v795 = vld [vmem:[#allocation5 + $0x2d0] sm:$0xff]
    %v796 = vld [vmem:[#allocation5 + $0x2d8] sm:$0xff]
    %v797 = vld [vmem:[#allocation5 + $0x2e0] sm:$0xff]
    %v798 = vld [vmem:[#allocation5 + $0x2e8] sm:$0xff]
    %v799 = vld [vmem:[#allocation5 + $0x2f0] sm:$0xff]
    %v800 = vld [vmem:[#allocation5 + $0x2f8] sm:$0xff]
    %v801 = vld [vmem:[#allocation5 + $0x300] sm:$0xff]
    %v802 = vld [vmem:[#allocation5 + $0x308] sm:$0xff]
    %v803 = vld [vmem:[#allocation5 + $0x310] sm:$0xff]
    %v804 = vld [vmem:[#allocation5 + $0x318] sm:$0xff]
    %v805 = vld [vmem:[#allocation5 + $0x320] sm:$0xff]
    %v806 = vld [vmem:[#allocation5 + $0x328] sm:$0xff]
    %v807 = vld [vmem:[#allocation5 + $0x330] sm:$0xff]
    %v808 = vld [vmem:[#allocation5 + $0x338] sm:$0xff]
    %v809 = vld [vmem:[#allocation5 + $0x340] sm:$0xff]
    %v810 = vld [vmem:[#allocation5 + $0x348] sm:$0xff]
    %v811 = vld [vmem:[#allocation5 + $0x350] sm:$0xff]
    %v812 = vld [vmem:[#allocation5 + $0x358] sm:$0xff]
    %v813 = vld [vmem:[#allocation5 + $0x360] sm:$0xff]
    %v814 = vld [vmem:[#allocation5 + $0x368] sm:$0xff]
    %v815 = vld [vmem:[#allocation5 + $0x370] sm:$0xff]
    %v816 = vld [vmem:[#allocation5 + $0x378] sm:$0xff]
    %v817 = vld [vmem:[#allocation5 + $0x380] sm:$0xff]
    %v818 = vld [vmem:[#allocation5 + $0x388] sm:$0xff]
    %v819 = vld [vmem:[#allocation5 + $0x390] sm:$0xff]
    %v820 = vld [vmem:[#allocation5 + $0x398] sm:$0xff]
    %v821 = vld [vmem:[#allocation5 + $0x3a0] sm:$0xff]
    %v822 = vld [vmem:[#allocation5 + $0x3a8] sm:$0xff]
    %v823 = vld [vmem:[#allocation5 + $0x3b0] sm:$0xff]
    %v824 = vld [vmem:[#allocation5 + $0x3b8] sm:$0xff]
    %v825 = vld [vmem:[#allocation5 + $0x3c0] sm:$0xff]
    %v826 = vld [vmem:[#allocation5 + $0x3c8] sm:$0xff]
    %v827 = vld [vmem:[#allocation5 + $0x3d0] sm:$0xff]
    %v828 = vld [vmem:[#allocation5 + $0x3d8] sm:$0xff]
    %v829 = vld [vmem:[#allocation5 + $0x3e0] sm:$0xff]
    %v830 = vld [vmem:[#allocation5 + $0x3e8] sm:$0xff]
    %v831 = vld [vmem:[#allocation5 + $0x3f0] sm:$0xff]
    %v832 = vld [vmem:[#allocation5 + $0x3f8] sm:$0xff]
    %v833 = vld [vmem:[#allocation5 + $0x400] sm:$0xff]
    %v834 = vld [vmem:[#allocation5 + $0x408] sm:$0xff]
    %v835 = vld [vmem:[#allocation5 + $0x410] sm:$0xff]
    %v836 = vld [vmem:[#allocation5 + $0x418] sm:$0xff]
    %v837 = vld [vmem:[#allocation5 + $0x420] sm:$0xff]
    %v838 = vld [vmem:[#allocation5 + $0x428] sm:$0xff]
    %v839 = vld [vmem:[#allocation5 + $0x430] sm:$0xff]
    %v840 = vld [vmem:[#allocation5 + $0x438] sm:$0xff]
    %v841 = vld [vmem:[#allocation5 + $0x440] sm:$0xff]
    %v842 = vld [vmem:[#allocation5 + $0x448] sm:$0xff]
    %v843 = vld [vmem:[#allocation5 + $0x450] sm:$0xff]
    %v844 = vld [vmem:[#allocation5 + $0x458] sm:$0xff]
    %v845 = vld [vmem:[#allocation5 + $0x460] sm:$0xff]
    %v846 = vld [vmem:[#allocation5 + $0x468] sm:$0xff]
    %v847 = vld [vmem:[#allocation5 + $0x470] sm:$0xff]
    %v848 = vld [vmem:[#allocation5 + $0x478] sm:$0xff]
    %v849 = vld [vmem:[#allocation5 + $0x480] sm:$0xff]
    %v850 = vld [vmem:[#allocation5 + $0x488] sm:$0xff]
    %v851 = vld [vmem:[#allocation5 + $0x490] sm:$0xff]
    %v852 = vld [vmem:[#allocation5 + $0x498] sm:$0xff]
    %v853 = vld [vmem:[#allocation5 + $0x4a0] sm:$0xff]
    %v854 = vld [vmem:[#allocation5 + $0x4a8] sm:$0xff]
    %v855 = vld [vmem:[#allocation5 + $0x4b0] sm:$0xff]
    %v856 = vld [vmem:[#allocation5 + $0x4b8] sm:$0xff]
    %v857 = vld [vmem:[#allocation5 + $0x4c0] sm:$0xff]
    %v858 = vld [vmem:[#allocation5 + $0x4c8] sm:$0xff]
    %v859 = vld [vmem:[#allocation5 + $0x4d0] sm:$0xff]
    %v860 = vld [vmem:[#allocation5 + $0x4d8] sm:$0xff]
    %v861 = vld [vmem:[#allocation5 + $0x4e0] sm:$0xff]
    %v862 = vld [vmem:[#allocation5 + $0x4e8] sm:$0xff]
    %v863 = vld [vmem:[#allocation5 + $0x4f0] sm:$0xff]
    %v864 = vld [vmem:[#allocation5 + $0x4f8] sm:$0xff]
    %v865 = vld [vmem:[#allocation5 + $0x500] sm:$0xff]
    %v866 = vld [vmem:[#allocation5 + $0x508] sm:$0xff]
    %v867 = vld [vmem:[#allocation5 + $0x510] sm:$0xff]
    %v868 = vld [vmem:[#allocation5 + $0x518] sm:$0xff]
    %v869 = vld [vmem:[#allocation5 + $0x520] sm:$0xff]
    %v870 = vld [vmem:[#allocation5 + $0x528] sm:$0xff]
    %v871 = vld [vmem:[#allocation5 + $0x530] sm:$0xff]
    %v872 = vld [vmem:[#allocation5 + $0x538] sm:$0xff]
    %v873 = vld [vmem:[#allocation5 + $0x540] sm:$0xff]
    %v874 = vld [vmem:[#allocation5 + $0x548] sm:$0xff]
    %v875 = vld [vmem:[#allocation5 + $0x550] sm:$0xff]
    %v876 = vld [vmem:[#allocation5 + $0x558] sm:$0xff]
    %v877 = vld [vmem:[#allocation5 + $0x560] sm:$0xff]
    %v878 = vld [vmem:[#allocation5 + $0x568] sm:$0xff]
    %v879 = vld [vmem:[#allocation5 + $0x570] sm:$0xff]
    %v880 = vld [vmem:[#allocation5 + $0x578] sm:$0xff]
    %v881 = vld [vmem:[#allocation5 + $0x580] sm:$0xff]
    %v882 = vld [vmem:[#allocation5 + $0x588] sm:$0xff]
    %v883 = vld [vmem:[#allocation5 + $0x590] sm:$0xff]
    %v884 = vld [vmem:[#allocation5 + $0x598] sm:$0xff]
    %v885 = vld [vmem:[#allocation5 + $0x5a0] sm:$0xff]
    %v886 = vld [vmem:[#allocation5 + $0x5a8] sm:$0xff]
    %v887 = vld [vmem:[#allocation5 + $0x5b0] sm:$0xff]
    %v888 = vld [vmem:[#allocation5 + $0x5b8] sm:$0xff]
    %v889 = vld [vmem:[#allocation5 + $0x5c0] sm:$0xff]
    %v890 = vld [vmem:[#allocation5 + $0x5c8] sm:$0xff]
    %v891 = vld [vmem:[#allocation5 + $0x5d0] sm:$0xff]
    %v892 = vld [vmem:[#allocation5 + $0x5d8] sm:$0xff]
    %v893 = vld [vmem:[#allocation5 + $0x5e0] sm:$0xff]
    %v894 = vld [vmem:[#allocation5 + $0x5e8] sm:$0xff]
    %v895 = vld [vmem:[#allocation5 + $0x5f0] sm:$0xff]
    %v896 = vld [vmem:[#allocation5 + $0x5f8] sm:$0xff]
    %v897 = vld [vmem:[#allocation5 + $0x600] sm:$0xff]
    %v898 = vld [vmem:[#allocation5 + $0x608] sm:$0xff]
    %v899 = vld [vmem:[#allocation5 + $0x610] sm:$0xff]
    %v900 = vld [vmem:[#allocation5 + $0x618] sm:$0xff]
    %v901 = vld [vmem:[#allocation5 + $0x620] sm:$0xff]
    %v902 = vld [vmem:[#allocation5 + $0x628] sm:$0xff]
    %v903 = vld [vmem:[#allocation5 + $0x630] sm:$0xff]
    %v904 = vld [vmem:[#allocation5 + $0x638] sm:$0xff]
    %v905 = vld [vmem:[#allocation5 + $0x640] sm:$0xff]
    %v906 = vld [vmem:[#allocation5 + $0x648] sm:$0xff]
    %v907 = vld [vmem:[#allocation5 + $0x650] sm:$0xff]
    %v908 = vld [vmem:[#allocation5 + $0x658] sm:$0xff]
    %v909 = vld [vmem:[#allocation5 + $0x660] sm:$0xff]
    %v910 = vld [vmem:[#allocation5 + $0x668] sm:$0xff]
    %v911 = vld [vmem:[#allocation5 + $0x670] sm:$0xff]
    %v912 = vld [vmem:[#allocation5 + $0x678] sm:$0xff]
    %v913 = vld [vmem:[#allocation5 + $0x680] sm:$0xff]
    %v914 = vld [vmem:[#allocation5 + $0x688] sm:$0xff]
    %v915 = vld [vmem:[#allocation5 + $0x690] sm:$0xff]
    %v916 = vld [vmem:[#allocation5 + $0x698] sm:$0xff]
    %v917 = vld [vmem:[#allocation5 + $0x6a0] sm:$0xff]
    %v918 = vld [vmem:[#allocation5 + $0x6a8] sm:$0xff]
    %v919 = vld [vmem:[#allocation5 + $0x6b0] sm:$0xff]
    %v920 = vld [vmem:[#allocation5 + $0x6b8] sm:$0xff]
    %v921 = vld [vmem:[#allocation5 + $0x6c0] sm:$0xff]
    %v922 = vld [vmem:[#allocation5 + $0x6c8] sm:$0xff]
    %v923 = vld [vmem:[#allocation5 + $0x6d0] sm:$0xff]
    %v924 = vld [vmem:[#allocation5 + $0x6d8] sm:$0xff]
    %v925 = vld [vmem:[#allocation5 + $0x6e0] sm:$0xff]
    %v926 = vld [vmem:[#allocation5 + $0x6e8] sm:$0xff]
    %v927 = vld [vmem:[#allocation5 + $0x6f0] sm:$0xff]
    %v928 = vld [vmem:[#allocation5 + $0x6f8] sm:$0xff]
    %v929 = vld [vmem:[#allocation5 + $0x700] sm:$0xff]
    %v930 = vld [vmem:[#allocation5 + $0x708] sm:$0xff]
    %v931 = vld [vmem:[#allocation5 + $0x710] sm:$0xff]
    %v932 = vld [vmem:[#allocation5 + $0x718] sm:$0xff]
    %v933 = vld [vmem:[#allocation5 + $0x720] sm:$0xff]
    %v934 = vld [vmem:[#allocation5 + $0x728] sm:$0xff]
    %v935 = vld [vmem:[#allocation5 + $0x730] sm:$0xff]
    %v936 = vld [vmem:[#allocation5 + $0x738] sm:$0xff]
    %v937 = vld [vmem:[#allocation5 + $0x740] sm:$0xff]
    %v938 = vld [vmem:[#allocation5 + $0x748] sm:$0xff]
    %v939 = vld [vmem:[#allocation5 + $0x750] sm:$0xff]
    %v940 = vld [vmem:[#allocation5 + $0x758] sm:$0xff]
    %v941 = vld [vmem:[#allocation5 + $0x760] sm:$0xff]
    %v942 = vld [vmem:[#allocation5 + $0x768] sm:$0xff]
    %v943 = vld [vmem:[#allocation5 + $0x770] sm:$0xff]
    %v944 = vld [vmem:[#allocation5 + $0x778] sm:$0xff]
    %v945 = vld [vmem:[#allocation5 + $0x780] sm:$0xff]
    %v946 = vld [vmem:[#allocation5 + $0x788] sm:$0xff]
    %v947 = vld [vmem:[#allocation5 + $0x790] sm:$0xff]
    %v948 = vld [vmem:[#allocation5 + $0x798] sm:$0xff]
    %v949 = vld [vmem:[#allocation5 + $0x7a0] sm:$0xff]
    %v950 = vld [vmem:[#allocation5 + $0x7a8] sm:$0xff]
    %v951 = vld [vmem:[#allocation5 + $0x7b0] sm:$0xff]
    %v952 = vld [vmem:[#allocation5 + $0x7b8] sm:$0xff]
    %v953 = vld [vmem:[#allocation5 + $0x7c0] sm:$0xff]
    %v954 = vld [vmem:[#allocation5 + $0x7c8] sm:$0xff]
    %v955 = vld [vmem:[#allocation5 + $0x7d0] sm:$0xff]
    %v956 = vld [vmem:[#allocation5 + $0x7d8] sm:$0xff]
    %v957 = vld [vmem:[#allocation5 + $0x7e0] sm:$0xff]
    %v958 = vld [vmem:[#allocation5 + $0x7e8] sm:$0xff]
    %v959 = vld [vmem:[#allocation5 + $0x7f0] sm:$0xff]
    %v960 = vld [vmem:[#allocation5 + $0x7f8] sm:$0xff]
    %v962 = vlaneseq
    %v963 = vshrl.u32 %v962, 7
    %v964 = vsub.s32 0, %v963
    %v965 = vrot.slane %v696, %v964
    %v966 = vlaneseq
    %v967 = vshrl.u32 %v966, 7
    %v968 = vsub.s32 1, %v967
    %v969 = vrot.slane %v696, %v968
    %v970 = vlaneseq
    %v971 = vshrl.u32 %v970, 7
    %v972 = vsub.s32 2, %v971
    %v973 = vrot.slane %v696, %v972
    %v974 = vlaneseq
    %v975 = vshrl.u32 %v974, 7
    %v976 = vsub.s32 3, %v975
    %v977 = vrot.slane %v696, %v976
    %v1238 = vunpack.c.l.b16 %v705
    %v1239 = vunpack.c.h.b16 %v705
    %v1240 = vunpack.c.l.b16 %v706
    %v1241 = vunpack.c.h.b16 %v706
    %v1242 = vunpack.c.l.b16 %v707
    %v1243 = vunpack.c.h.b16 %v707
    %v1244 = vunpack.c.l.b16 %v708
    %v1245 = vunpack.c.h.b16 %v708
    %v1246 = vunpack.c.l.b16 %v709
    %v1247 = vunpack.c.h.b16 %v709
    %v1248 = vunpack.c.l.b16 %v710
    %v1249 = vunpack.c.h.b16 %v710
    %v1250 = vunpack.c.l.b16 %v711
    %v1251 = vunpack.c.h.b16 %v711
    %v1252 = vunpack.c.l.b16 %v712
    %v1253 = vunpack.c.h.b16 %v712
    %v1254 = vunpack.c.l.b16 %v713
    %v1255 = vunpack.c.h.b16 %v713
    %v1256 = vunpack.c.l.b16 %v714
    %v1257 = vunpack.c.h.b16 %v714
    %v1258 = vunpack.c.l.b16 %v715
    %v1259 = vunpack.c.h.b16 %v715
    %v1260 = vunpack.c.l.b16 %v716
    %v1261 = vunpack.c.h.b16 %v716
    %v1262 = vunpack.c.l.b16 %v717
    %v1263 = vunpack.c.h.b16 %v717
    %v1264 = vunpack.c.l.b16 %v718
    %v1265 = vunpack.c.h.b16 %v718
    %v1266 = vunpack.c.l.b16 %v719
    %v1267 = vunpack.c.h.b16 %v719
    %v1268 = vunpack.c.l.b16 %v720
    %v1269 = vunpack.c.h.b16 %v720
    %v1270 = vunpack.c.l.b16 %v721
    %v1271 = vunpack.c.h.b16 %v721
    %v1272 = vunpack.c.l.b16 %v722
    %v1273 = vunpack.c.h.b16 %v722
    %v1274 = vunpack.c.l.b16 %v723
    %v1275 = vunpack.c.h.b16 %v723
    %v1276 = vunpack.c.l.b16 %v724
    %v1277 = vunpack.c.h.b16 %v724
    %v1278 = vunpack.c.l.b16 %v725
    %v1279 = vunpack.c.h.b16 %v725
    %v1280 = vunpack.c.l.b16 %v726
    %v1281 = vunpack.c.h.b16 %v726
    %v1282 = vunpack.c.l.b16 %v727
    %v1283 = vunpack.c.h.b16 %v727
    %v1284 = vunpack.c.l.b16 %v728
    %v1285 = vunpack.c.h.b16 %v728
    %v1286 = vunpack.c.l.b16 %v729
    %v1287 = vunpack.c.h.b16 %v729
    %v1288 = vunpack.c.l.b16 %v730
    %v1289 = vunpack.c.h.b16 %v730
    %v1290 = vunpack.c.l.b16 %v731
    %v1291 = vunpack.c.h.b16 %v731
    %v1292 = vunpack.c.l.b16 %v732
    %v1293 = vunpack.c.h.b16 %v732
    %v1294 = vunpack.c.l.b16 %v733
    %v1295 = vunpack.c.h.b16 %v733
    %v1296 = vunpack.c.l.b16 %v734
    %v1297 = vunpack.c.h.b16 %v734
    %v1298 = vunpack.c.l.b16 %v735
    %v1299 = vunpack.c.h.b16 %v735
    %v1300 = vunpack.c.l.b16 %v736
    %v1301 = vunpack.c.h.b16 %v736
    %v1302 = vunpack.c.l.b16 %v737
    %v1303 = vunpack.c.h.b16 %v737
    %v1304 = vunpack.c.l.b16 %v738
    %v1305 = vunpack.c.h.b16 %v738
    %v1306 = vunpack.c.l.b16 %v739
    %v1307 = vunpack.c.h.b16 %v739
    %v1308 = vunpack.c.l.b16 %v740
    %v1309 = vunpack.c.h.b16 %v740
    %v1310 = vunpack.c.l.b16 %v741
    %v1311 = vunpack.c.h.b16 %v741
    %v1312 = vunpack.c.l.b16 %v742
    %v1313 = vunpack.c.h.b16 %v742
    %v1314 = vunpack.c.l.b16 %v743
    %v1315 = vunpack.c.h.b16 %v743
    %v1316 = vunpack.c.l.b16 %v744
    %v1317 = vunpack.c.h.b16 %v744
    %v1318 = vunpack.c.l.b16 %v745
    %v1319 = vunpack.c.h.b16 %v745
    %v1320 = vunpack.c.l.b16 %v746
    %v1321 = vunpack.c.h.b16 %v746
    %v1322 = vunpack.c.l.b16 %v747
    %v1323 = vunpack.c.h.b16 %v747
    %v1324 = vunpack.c.l.b16 %v748
    %v1325 = vunpack.c.h.b16 %v748
    %v1326 = vunpack.c.l.b16 %v749
    %v1327 = vunpack.c.h.b16 %v749
    %v1328 = vunpack.c.l.b16 %v750
    %v1329 = vunpack.c.h.b16 %v750
    %v1330 = vunpack.c.l.b16 %v751
    %v1331 = vunpack.c.h.b16 %v751
    %v1332 = vunpack.c.l.b16 %v752
    %v1333 = vunpack.c.h.b16 %v752
    %v1334 = vunpack.c.l.b16 %v753
    %v1335 = vunpack.c.h.b16 %v753
    %v1336 = vunpack.c.l.b16 %v754
    %v1337 = vunpack.c.h.b16 %v754
    %v1338 = vunpack.c.l.b16 %v755
    %v1339 = vunpack.c.h.b16 %v755
    %v1340 = vunpack.c.l.b16 %v756
    %v1341 = vunpack.c.h.b16 %v756
    %v1342 = vunpack.c.l.b16 %v757
    %v1343 = vunpack.c.h.b16 %v757
    %v1344 = vunpack.c.l.b16 %v758
    %v1345 = vunpack.c.h.b16 %v758
    %v1346 = vunpack.c.l.b16 %v759
    %v1347 = vunpack.c.h.b16 %v759
    %v1348 = vunpack.c.l.b16 %v760
    %v1349 = vunpack.c.h.b16 %v760
    %v1350 = vunpack.c.l.b16 %v761
    %v1351 = vunpack.c.h.b16 %v761
    %v1352 = vunpack.c.l.b16 %v762
    %v1353 = vunpack.c.h.b16 %v762
    %v1354 = vunpack.c.l.b16 %v763
    %v1355 = vunpack.c.h.b16 %v763
    %v1356 = vunpack.c.l.b16 %v764
    %v1357 = vunpack.c.h.b16 %v764
    %v1358 = vunpack.c.l.b16 %v765
    %v1359 = vunpack.c.h.b16 %v765
    %v1360 = vunpack.c.l.b16 %v766
    %v1361 = vunpack.c.h.b16 %v766
    %v1362 = vunpack.c.l.b16 %v767
    %v1363 = vunpack.c.h.b16 %v767
    %v1364 = vunpack.c.l.b16 %v768
    %v1365 = vunpack.c.h.b16 %v768
    %v1366 = vunpack.c.l.b16 %v769
    %v1367 = vunpack.c.h.b16 %v769
    %v1368 = vunpack.c.l.b16 %v770
    %v1369 = vunpack.c.h.b16 %v770
    %v1370 = vunpack.c.l.b16 %v771
    %v1371 = vunpack.c.h.b16 %v771
    %v1372 = vunpack.c.l.b16 %v772
    %v1373 = vunpack.c.h.b16 %v772
    %v1374 = vunpack.c.l.b16 %v773
    %v1375 = vunpack.c.h.b16 %v773
    %v1376 = vunpack.c.l.b16 %v774
    %v1377 = vunpack.c.h.b16 %v774
    %v1378 = vunpack.c.l.b16 %v775
    %v1379 = vunpack.c.h.b16 %v775
    %v1380 = vunpack.c.l.b16 %v776
    %v1381 = vunpack.c.h.b16 %v776
    %v1382 = vunpack.c.l.b16 %v777
    %v1383 = vunpack.c.h.b16 %v777
    %v1384 = vunpack.c.l.b16 %v778
    %v1385 = vunpack.c.h.b16 %v778
    %v1386 = vunpack.c.l.b16 %v779
    %v1387 = vunpack.c.h.b16 %v779
    %v1388 = vunpack.c.l.b16 %v780
    %v1389 = vunpack.c.h.b16 %v780
    %v1390 = vunpack.c.l.b16 %v781
    %v1391 = vunpack.c.h.b16 %v781
    %v1392 = vunpack.c.l.b16 %v782
    %v1393 = vunpack.c.h.b16 %v782
    %v1394 = vunpack.c.l.b16 %v783
    %v1395 = vunpack.c.h.b16 %v783
    %v1396 = vunpack.c.l.b16 %v784
    %v1397 = vunpack.c.h.b16 %v784
    %v1398 = vunpack.c.l.b16 %v785
    %v1399 = vunpack.c.h.b16 %v785
    %v1400 = vunpack.c.l.b16 %v786
    %v1401 = vunpack.c.h.b16 %v786
    %v1402 = vunpack.c.l.b16 %v787
    %v1403 = vunpack.c.h.b16 %v787
    %v1404 = vunpack.c.l.b16 %v788
    %v1405 = vunpack.c.h.b16 %v788
    %v1406 = vunpack.c.l.b16 %v789
    %v1407 = vunpack.c.h.b16 %v789
    %v1408 = vunpack.c.l.b16 %v790
    %v1409 = vunpack.c.h.b16 %v790
    %v1410 = vunpack.c.l.b16 %v791
    %v1411 = vunpack.c.h.b16 %v791
    %v1412 = vunpack.c.l.b16 %v792
    %v1413 = vunpack.c.h.b16 %v792
    %v1414 = vunpack.c.l.b16 %v793
    %v1415 = vunpack.c.h.b16 %v793
    %v1416 = vunpack.c.l.b16 %v794
    %v1417 = vunpack.c.h.b16 %v794
    %v1418 = vunpack.c.l.b16 %v795
    %v1419 = vunpack.c.h.b16 %v795
    %v1420 = vunpack.c.l.b16 %v796
    %v1421 = vunpack.c.h.b16 %v796
    %v1422 = vunpack.c.l.b16 %v797
    %v1423 = vunpack.c.h.b16 %v797
    %v1424 = vunpack.c.l.b16 %v798
    %v1425 = vunpack.c.h.b16 %v798
    %v1426 = vunpack.c.l.b16 %v799
    %v1427 = vunpack.c.h.b16 %v799
    %v1428 = vunpack.c.l.b16 %v800
    %v1429 = vunpack.c.h.b16 %v800
    %v1430 = vunpack.c.l.b16 %v801
    %v1431 = vunpack.c.h.b16 %v801
    %v1432 = vunpack.c.l.b16 %v802
    %v1433 = vunpack.c.h.b16 %v802
    %v1434 = vunpack.c.l.b16 %v803
    %v1435 = vunpack.c.h.b16 %v803
    %v1436 = vunpack.c.l.b16 %v804
    %v1437 = vunpack.c.h.b16 %v804
    %v1438 = vunpack.c.l.b16 %v805
    %v1439 = vunpack.c.h.b16 %v805
    %v1440 = vunpack.c.l.b16 %v806
    %v1441 = vunpack.c.h.b16 %v806
    %v1442 = vunpack.c.l.b16 %v807
    %v1443 = vunpack.c.h.b16 %v807
    %v1444 = vunpack.c.l.b16 %v808
    %v1445 = vunpack.c.h.b16 %v808
    %v1446 = vunpack.c.l.b16 %v809
    %v1447 = vunpack.c.h.b16 %v809
    %v1448 = vunpack.c.l.b16 %v810
    %v1449 = vunpack.c.h.b16 %v810
    %v1450 = vunpack.c.l.b16 %v811
    %v1451 = vunpack.c.h.b16 %v811
    %v1452 = vunpack.c.l.b16 %v812
    %v1453 = vunpack.c.h.b16 %v812
    %v1454 = vunpack.c.l.b16 %v813
    %v1455 = vunpack.c.h.b16 %v813
    %v1456 = vunpack.c.l.b16 %v814
    %v1457 = vunpack.c.h.b16 %v814
    %v1458 = vunpack.c.l.b16 %v815
    %v1459 = vunpack.c.h.b16 %v815
    %v1460 = vunpack.c.l.b16 %v816
    %v1461 = vunpack.c.h.b16 %v816
    %v1462 = vunpack.c.l.b16 %v817
    %v1463 = vunpack.c.h.b16 %v817
    %v1464 = vunpack.c.l.b16 %v818
    %v1465 = vunpack.c.h.b16 %v818
    %v1466 = vunpack.c.l.b16 %v819
    %v1467 = vunpack.c.h.b16 %v819
    %v1468 = vunpack.c.l.b16 %v820
    %v1469 = vunpack.c.h.b16 %v820
    %v1470 = vunpack.c.l.b16 %v821
    %v1471 = vunpack.c.h.b16 %v821
    %v1472 = vunpack.c.l.b16 %v822
    %v1473 = vunpack.c.h.b16 %v822
    %v1474 = vunpack.c.l.b16 %v823
    %v1475 = vunpack.c.h.b16 %v823
    %v1476 = vunpack.c.l.b16 %v824
    %v1477 = vunpack.c.h.b16 %v824
    %v1478 = vunpack.c.l.b16 %v825
    %v1479 = vunpack.c.h.b16 %v825
    %v1480 = vunpack.c.l.b16 %v826
    %v1481 = vunpack.c.h.b16 %v826
    %v1482 = vunpack.c.l.b16 %v827
    %v1483 = vunpack.c.h.b16 %v827
    %v1484 = vunpack.c.l.b16 %v828
    %v1485 = vunpack.c.h.b16 %v828
    %v1486 = vunpack.c.l.b16 %v829
    %v1487 = vunpack.c.h.b16 %v829
    %v1488 = vunpack.c.l.b16 %v830
    %v1489 = vunpack.c.h.b16 %v830
    %v1490 = vunpack.c.l.b16 %v831
    %v1491 = vunpack.c.h.b16 %v831
    %v1492 = vunpack.c.l.b16 %v832
    %v1493 = vunpack.c.h.b16 %v832
    %v1494 = vunpack.c.l.b16 %v833
    %v1495 = vunpack.c.h.b16 %v833
    %v1496 = vunpack.c.l.b16 %v834
    %v1497 = vunpack.c.h.b16 %v834
    %v1498 = vunpack.c.l.b16 %v835
    %v1499 = vunpack.c.h.b16 %v835
    %v1500 = vunpack.c.l.b16 %v836
    %v1501 = vunpack.c.h.b16 %v836
    %v1502 = vunpack.c.l.b16 %v837
    %v1503 = vunpack.c.h.b16 %v837
    %v1504 = vunpack.c.l.b16 %v838
    %v1505 = vunpack.c.h.b16 %v838
    %v1506 = vunpack.c.l.b16 %v839
    %v1507 = vunpack.c.h.b16 %v839
    %v1508 = vunpack.c.l.b16 %v840
    %v1509 = vunpack.c.h.b16 %v840
    %v1510 = vunpack.c.l.b16 %v841
    %v1511 = vunpack.c.h.b16 %v841
    %v1512 = vunpack.c.l.b16 %v842
    %v1513 = vunpack.c.h.b16 %v842
    %v1514 = vunpack.c.l.b16 %v843
    %v1515 = vunpack.c.h.b16 %v843
    %v1516 = vunpack.c.l.b16 %v844
    %v1517 = vunpack.c.h.b16 %v844
    %v1518 = vunpack.c.l.b16 %v845
    %v1519 = vunpack.c.h.b16 %v845
    %v1520 = vunpack.c.l.b16 %v846
    %v1521 = vunpack.c.h.b16 %v846
    %v1522 = vunpack.c.l.b16 %v847
    %v1523 = vunpack.c.h.b16 %v847
    %v1524 = vunpack.c.l.b16 %v848
    %v1525 = vunpack.c.h.b16 %v848
    %v1526 = vunpack.c.l.b16 %v849
    %v1527 = vunpack.c.h.b16 %v849
    %v1528 = vunpack.c.l.b16 %v850
    %v1529 = vunpack.c.h.b16 %v850
    %v1530 = vunpack.c.l.b16 %v851
    %v1531 = vunpack.c.h.b16 %v851
    %v1532 = vunpack.c.l.b16 %v852
    %v1533 = vunpack.c.h.b16 %v852
    %v1534 = vunpack.c.l.b16 %v853
    %v1535 = vunpack.c.h.b16 %v853
    %v1536 = vunpack.c.l.b16 %v854
    %v1537 = vunpack.c.h.b16 %v854
    %v1538 = vunpack.c.l.b16 %v855
    %v1539 = vunpack.c.h.b16 %v855
    %v1540 = vunpack.c.l.b16 %v856
    %v1541 = vunpack.c.h.b16 %v856
    %v1542 = vunpack.c.l.b16 %v857
    %v1543 = vunpack.c.h.b16 %v857
    %v1544 = vunpack.c.l.b16 %v858
    %v1545 = vunpack.c.h.b16 %v858
    %v1546 = vunpack.c.l.b16 %v859
    %v1547 = vunpack.c.h.b16 %v859
    %v1548 = vunpack.c.l.b16 %v860
    %v1549 = vunpack.c.h.b16 %v860
    %v1550 = vunpack.c.l.b16 %v861
    %v1551 = vunpack.c.h.b16 %v861
    %v1552 = vunpack.c.l.b16 %v862
    %v1553 = vunpack.c.h.b16 %v862
    %v1554 = vunpack.c.l.b16 %v863
    %v1555 = vunpack.c.h.b16 %v863
    %v1556 = vunpack.c.l.b16 %v864
    %v1557 = vunpack.c.h.b16 %v864
    %v1558 = vunpack.c.l.b16 %v865
    %v1559 = vunpack.c.h.b16 %v865
    %v1560 = vunpack.c.l.b16 %v866
    %v1561 = vunpack.c.h.b16 %v866
    %v1562 = vunpack.c.l.b16 %v867
    %v1563 = vunpack.c.h.b16 %v867
    %v1564 = vunpack.c.l.b16 %v868
    %v1565 = vunpack.c.h.b16 %v868
    %v1566 = vunpack.c.l.b16 %v869
    %v1567 = vunpack.c.h.b16 %v869
    %v1568 = vunpack.c.l.b16 %v870
    %v1569 = vunpack.c.h.b16 %v870
    %v1570 = vunpack.c.l.b16 %v871
    %v1571 = vunpack.c.h.b16 %v871
    %v1572 = vunpack.c.l.b16 %v872
    %v1573 = vunpack.c.h.b16 %v872
    %v1574 = vunpack.c.l.b16 %v873
    %v1575 = vunpack.c.h.b16 %v873
    %v1576 = vunpack.c.l.b16 %v874
    %v1577 = vunpack.c.h.b16 %v874
    %v1578 = vunpack.c.l.b16 %v875
    %v1579 = vunpack.c.h.b16 %v875
    %v1580 = vunpack.c.l.b16 %v876
    %v1581 = vunpack.c.h.b16 %v876
    %v1582 = vunpack.c.l.b16 %v877
    %v1583 = vunpack.c.h.b16 %v877
    %v1584 = vunpack.c.l.b16 %v878
    %v1585 = vunpack.c.h.b16 %v878
    %v1586 = vunpack.c.l.b16 %v879
    %v1587 = vunpack.c.h.b16 %v879
    %v1588 = vunpack.c.l.b16 %v880
    %v1589 = vunpack.c.h.b16 %v880
    %v1590 = vunpack.c.l.b16 %v881
    %v1591 = vunpack.c.h.b16 %v881
    %v1592 = vunpack.c.l.b16 %v882
    %v1593 = vunpack.c.h.b16 %v882
    %v1594 = vunpack.c.l.b16 %v883
    %v1595 = vunpack.c.h.b16 %v883
    %v1596 = vunpack.c.l.b16 %v884
    %v1597 = vunpack.c.h.b16 %v884
    %v1598 = vunpack.c.l.b16 %v885
    %v1599 = vunpack.c.h.b16 %v885
    %v1600 = vunpack.c.l.b16 %v886
    %v1601 = vunpack.c.h.b16 %v886
    %v1602 = vunpack.c.l.b16 %v887
    %v1603 = vunpack.c.h.b16 %v887
    %v1604 = vunpack.c.l.b16 %v888
    %v1605 = vunpack.c.h.b16 %v888
    %v1606 = vunpack.c.l.b16 %v889
    %v1607 = vunpack.c.h.b16 %v889
    %v1608 = vunpack.c.l.b16 %v890
    %v1609 = vunpack.c.h.b16 %v890
    %v1610 = vunpack.c.l.b16 %v891
    %v1611 = vunpack.c.h.b16 %v891
    %v1612 = vunpack.c.l.b16 %v892
    %v1613 = vunpack.c.h.b16 %v892
    %v1614 = vunpack.c.l.b16 %v893
    %v1615 = vunpack.c.h.b16 %v893
    %v1616 = vunpack.c.l.b16 %v894
    %v1617 = vunpack.c.h.b16 %v894
    %v1618 = vunpack.c.l.b16 %v895
    %v1619 = vunpack.c.h.b16 %v895
    %v1620 = vunpack.c.l.b16 %v896
    %v1621 = vunpack.c.h.b16 %v896
    %v1622 = vunpack.c.l.b16 %v897
    %v1623 = vunpack.c.h.b16 %v897
    %v1624 = vunpack.c.l.b16 %v898
    %v1625 = vunpack.c.h.b16 %v898
    %v1626 = vunpack.c.l.b16 %v899
    %v1627 = vunpack.c.h.b16 %v899
    %v1628 = vunpack.c.l.b16 %v900
    %v1629 = vunpack.c.h.b16 %v900
    %v1630 = vunpack.c.l.b16 %v901
    %v1631 = vunpack.c.h.b16 %v901
    %v1632 = vunpack.c.l.b16 %v902
    %v1633 = vunpack.c.h.b16 %v902
    %v1634 = vunpack.c.l.b16 %v903
    %v1635 = vunpack.c.h.b16 %v903
    %v1636 = vunpack.c.l.b16 %v904
    %v1637 = vunpack.c.h.b16 %v904
    %v1638 = vunpack.c.l.b16 %v905
    %v1639 = vunpack.c.h.b16 %v905
    %v1640 = vunpack.c.l.b16 %v906
    %v1641 = vunpack.c.h.b16 %v906
    %v1642 = vunpack.c.l.b16 %v907
    %v1643 = vunpack.c.h.b16 %v907
    %v1644 = vunpack.c.l.b16 %v908
    %v1645 = vunpack.c.h.b16 %v908
    %v1646 = vunpack.c.l.b16 %v909
    %v1647 = vunpack.c.h.b16 %v909
    %v1648 = vunpack.c.l.b16 %v910
    %v1649 = vunpack.c.h.b16 %v910
    %v1650 = vunpack.c.l.b16 %v911
    %v1651 = vunpack.c.h.b16 %v911
    %v1652 = vunpack.c.l.b16 %v912
    %v1653 = vunpack.c.h.b16 %v912
    %v1654 = vunpack.c.l.b16 %v913
    %v1655 = vunpack.c.h.b16 %v913
    %v1656 = vunpack.c.l.b16 %v914
    %v1657 = vunpack.c.h.b16 %v914
    %v1658 = vunpack.c.l.b16 %v915
    %v1659 = vunpack.c.h.b16 %v915
    %v1660 = vunpack.c.l.b16 %v916
    %v1661 = vunpack.c.h.b16 %v916
    %v1662 = vunpack.c.l.b16 %v917
    %v1663 = vunpack.c.h.b16 %v917
    %v1664 = vunpack.c.l.b16 %v918
    %v1665 = vunpack.c.h.b16 %v918
    %v1666 = vunpack.c.l.b16 %v919
    %v1667 = vunpack.c.h.b16 %v919
    %v1668 = vunpack.c.l.b16 %v920
    %v1669 = vunpack.c.h.b16 %v920
    %v1670 = vunpack.c.l.b16 %v921
    %v1671 = vunpack.c.h.b16 %v921
    %v1672 = vunpack.c.l.b16 %v922
    %v1673 = vunpack.c.h.b16 %v922
    %v1674 = vunpack.c.l.b16 %v923
    %v1675 = vunpack.c.h.b16 %v923
    %v1676 = vunpack.c.l.b16 %v924
    %v1677 = vunpack.c.h.b16 %v924
    %v1678 = vunpack.c.l.b16 %v925
    %v1679 = vunpack.c.h.b16 %v925
    %v1680 = vunpack.c.l.b16 %v926
    %v1681 = vunpack.c.h.b16 %v926
    %v1682 = vunpack.c.l.b16 %v927
    %v1683 = vunpack.c.h.b16 %v927
    %v1684 = vunpack.c.l.b16 %v928
    %v1685 = vunpack.c.h.b16 %v928
    %v1686 = vunpack.c.l.b16 %v929
    %v1687 = vunpack.c.h.b16 %v929
    %v1688 = vunpack.c.l.b16 %v930
    %v1689 = vunpack.c.h.b16 %v930
    %v1690 = vunpack.c.l.b16 %v931
    %v1691 = vunpack.c.h.b16 %v931
    %v1692 = vunpack.c.l.b16 %v932
    %v1693 = vunpack.c.h.b16 %v932
    %v1694 = vunpack.c.l.b16 %v933
    %v1695 = vunpack.c.h.b16 %v933
    %v1696 = vunpack.c.l.b16 %v934
    %v1697 = vunpack.c.h.b16 %v934
    %v1698 = vunpack.c.l.b16 %v935
    %v1699 = vunpack.c.h.b16 %v935
    %v1700 = vunpack.c.l.b16 %v936
    %v1701 = vunpack.c.h.b16 %v936
    %v1702 = vunpack.c.l.b16 %v937
    %v1703 = vunpack.c.h.b16 %v937
    %v1704 = vunpack.c.l.b16 %v938
    %v1705 = vunpack.c.h.b16 %v938
    %v1706 = vunpack.c.l.b16 %v939
    %v1707 = vunpack.c.h.b16 %v939
    %v1708 = vunpack.c.l.b16 %v940
    %v1709 = vunpack.c.h.b16 %v940
    %v1710 = vunpack.c.l.b16 %v941
    %v1711 = vunpack.c.h.b16 %v941
    %v1712 = vunpack.c.l.b16 %v942
    %v1713 = vunpack.c.h.b16 %v942
    %v1714 = vunpack.c.l.b16 %v943
    %v1715 = vunpack.c.h.b16 %v943
    %v1716 = vunpack.c.l.b16 %v944
    %v1717 = vunpack.c.h.b16 %v944
    %v1718 = vunpack.c.l.b16 %v945
    %v1719 = vunpack.c.h.b16 %v945
    %v1720 = vunpack.c.l.b16 %v946
    %v1721 = vunpack.c.h.b16 %v946
    %v1722 = vunpack.c.l.b16 %v947
    %v1723 = vunpack.c.h.b16 %v947
    %v1724 = vunpack.c.l.b16 %v948
    %v1725 = vunpack.c.h.b16 %v948
    %v1726 = vunpack.c.l.b16 %v949
    %v1727 = vunpack.c.h.b16 %v949
    %v1728 = vunpack.c.l.b16 %v950
    %v1729 = vunpack.c.h.b16 %v950
    %v1730 = vunpack.c.l.b16 %v951
    %v1731 = vunpack.c.h.b16 %v951
    %v1732 = vunpack.c.l.b16 %v952
    %v1733 = vunpack.c.h.b16 %v952
    %v1734 = vunpack.c.l.b16 %v953
    %v1735 = vunpack.c.h.b16 %v953
    %v1736 = vunpack.c.l.b16 %v954
    %v1737 = vunpack.c.h.b16 %v954
    %v1738 = vunpack.c.l.b16 %v955
    %v1739 = vunpack.c.h.b16 %v955
    %v1740 = vunpack.c.l.b16 %v956
    %v1741 = vunpack.c.h.b16 %v956
    %v1742 = vunpack.c.l.b16 %v957
    %v1743 = vunpack.c.h.b16 %v957
    %v1744 = vunpack.c.l.b16 %v958
    %v1745 = vunpack.c.h.b16 %v958
    %v1746 = vunpack.c.l.b16 %v959
    %v1747 = vunpack.c.h.b16 %v959
    %v1748 = vunpack.c.l.b16 %v960
    %v1749 = vunpack.c.h.b16 %v960
    %v1750 = vpack.c.b16 %v1242, %v1238
    %v1751 = vpack.c.b16 %v1243, %v1239
    %v1752 = vpack.c.b16 %v1244, %v1240
    %v1753 = vpack.c.b16 %v1245, %v1241
    %v1754 = vpack.c.b16 %v1250, %v1246
    %v1755 = vpack.c.b16 %v1251, %v1247
    %v1756 = vpack.c.b16 %v1252, %v1248
    %v1757 = vpack.c.b16 %v1253, %v1249
    %v1758 = vpack.c.b16 %v1258, %v1254
    %v1759 = vpack.c.b16 %v1259, %v1255
    %v1760 = vpack.c.b16 %v1260, %v1256
    %v1761 = vpack.c.b16 %v1261, %v1257
    %v1762 = vpack.c.b16 %v1266, %v1262
    %v1763 = vpack.c.b16 %v1267, %v1263
    %v1764 = vpack.c.b16 %v1268, %v1264
    %v1765 = vpack.c.b16 %v1269, %v1265
    %v1766 = vpack.c.b16 %v1274, %v1270
    %v1767 = vpack.c.b16 %v1275, %v1271
    %v1768 = vpack.c.b16 %v1276, %v1272
    %v1769 = vpack.c.b16 %v1277, %v1273
    %v1770 = vpack.c.b16 %v1282, %v1278
    %v1771 = vpack.c.b16 %v1283, %v1279
    %v1772 = vpack.c.b16 %v1284, %v1280
    %v1773 = vpack.c.b16 %v1285, %v1281
    %v1774 = vpack.c.b16 %v1290, %v1286
    %v1775 = vpack.c.b16 %v1291, %v1287
    %v1776 = vpack.c.b16 %v1292, %v1288
    %v1777 = vpack.c.b16 %v1293, %v1289
    %v1778 = vpack.c.b16 %v1298, %v1294
    %v1779 = vpack.c.b16 %v1299, %v1295
    %v1780 = vpack.c.b16 %v1300, %v1296
    %v1781 = vpack.c.b16 %v1301, %v1297
    %v1782 = vpack.c.b16 %v1306, %v1302
    %v1783 = vpack.c.b16 %v1307, %v1303
    %v1784 = vpack.c.b16 %v1308, %v1304
    %v1785 = vpack.c.b16 %v1309, %v1305
    %v1786 = vpack.c.b16 %v1314, %v1310
    %v1787 = vpack.c.b16 %v1315, %v1311
    %v1788 = vpack.c.b16 %v1316, %v1312
    %v1789 = vpack.c.b16 %v1317, %v1313
    %v1790 = vpack.c.b16 %v1322, %v1318
    %v1791 = vpack.c.b16 %v1323, %v1319
    %v1792 = vpack.c.b16 %v1324, %v1320
    %v1793 = vpack.c.b16 %v1325, %v1321
    %v1794 = vpack.c.b16 %v1330, %v1326
    %v1795 = vpack.c.b16 %v1331, %v1327
    %v1796 = vpack.c.b16 %v1332, %v1328
    %v1797 = vpack.c.b16 %v1333, %v1329
    %v1798 = vpack.c.b16 %v1338, %v1334
    %v1799 = vpack.c.b16 %v1339, %v1335
    %v1800 = vpack.c.b16 %v1340, %v1336
    %v1801 = vpack.c.b16 %v1341, %v1337
    %v1802 = vpack.c.b16 %v1346, %v1342
    %v1803 = vpack.c.b16 %v1347, %v1343
    %v1804 = vpack.c.b16 %v1348, %v1344
    %v1805 = vpack.c.b16 %v1349, %v1345
    %v1806 = vpack.c.b16 %v1354, %v1350
    %v1807 = vpack.c.b16 %v1355, %v1351
    %v1808 = vpack.c.b16 %v1356, %v1352
    %v1809 = vpack.c.b16 %v1357, %v1353
    %v1810 = vpack.c.b16 %v1362, %v1358
    %v1811 = vpack.c.b16 %v1363, %v1359
    %v1812 = vpack.c.b16 %v1364, %v1360
    %v1813 = vpack.c.b16 %v1365, %v1361
    %v1814 = vpack.c.b16 %v1370, %v1366
    %v1815 = vpack.c.b16 %v1371, %v1367
    %v1816 = vpack.c.b16 %v1372, %v1368
    %v1817 = vpack.c.b16 %v1373, %v1369
    %v1818 = vpack.c.b16 %v1378, %v1374
    %v1819 = vpack.c.b16 %v1379, %v1375
    %v1820 = vpack.c.b16 %v1380, %v1376
    %v1821 = vpack.c.b16 %v1381, %v1377
    %v1822 = vpack.c.b16 %v1386, %v1382
    %v1823 = vpack.c.b16 %v1387, %v1383
    %v1824 = vpack.c.b16 %v1388, %v1384
    %v1825 = vpack.c.b16 %v1389, %v1385
    %v1826 = vpack.c.b16 %v1394, %v1390
    %v1827 = vpack.c.b16 %v1395, %v1391
    %v1828 = vpack.c.b16 %v1396, %v1392
    %v1829 = vpack.c.b16 %v1397, %v1393
    %v1830 = vpack.c.b16 %v1402, %v1398
    %v1831 = vpack.c.b16 %v1403, %v1399
    %v1832 = vpack.c.b16 %v1404, %v1400
    %v1833 = vpack.c.b16 %v1405, %v1401
    %v1834 = vpack.c.b16 %v1410, %v1406
    %v1835 = vpack.c.b16 %v1411, %v1407
    %v1836 = vpack.c.b16 %v1412, %v1408
    %v1837 = vpack.c.b16 %v1413, %v1409
    %v1838 = vpack.c.b16 %v1418, %v1414
    %v1839 = vpack.c.b16 %v1419, %v1415
    %v1840 = vpack.c.b16 %v1420, %v1416
    %v1841 = vpack.c.b16 %v1421, %v1417
    %v1842 = vpack.c.b16 %v1426, %v1422
    %v1843 = vpack.c.b16 %v1427, %v1423
    %v1844 = vpack.c.b16 %v1428, %v1424
    %v1845 = vpack.c.b16 %v1429, %v1425
    %v1846 = vpack.c.b16 %v1434, %v1430
    %v1847 = vpack.c.b16 %v1435, %v1431
    %v1848 = vpack.c.b16 %v1436, %v1432
    %v1849 = vpack.c.b16 %v1437, %v1433
    %v1850 = vpack.c.b16 %v1442, %v1438
    %v1851 = vpack.c.b16 %v1443, %v1439
    %v1852 = vpack.c.b16 %v1444, %v1440
    %v1853 = vpack.c.b16 %v1445, %v1441
    %v1854 = vpack.c.b16 %v1450, %v1446
    %v1855 = vpack.c.b16 %v1451, %v1447
    %v1856 = vpack.c.b16 %v1452, %v1448
    %v1857 = vpack.c.b16 %v1453, %v1449
    %v1858 = vpack.c.b16 %v1458, %v1454
    %v1859 = vpack.c.b16 %v1459, %v1455
    %v1860 = vpack.c.b16 %v1460, %v1456
    %v1861 = vpack.c.b16 %v1461, %v1457
    %v1862 = vpack.c.b16 %v1466, %v1462
    %v1863 = vpack.c.b16 %v1467, %v1463
    %v1864 = vpack.c.b16 %v1468, %v1464
    %v1865 = vpack.c.b16 %v1469, %v1465
    %v1866 = vpack.c.b16 %v1474, %v1470
    %v1867 = vpack.c.b16 %v1475, %v1471
    %v1868 = vpack.c.b16 %v1476, %v1472
    %v1869 = vpack.c.b16 %v1477, %v1473
    %v1870 = vpack.c.b16 %v1482, %v1478
    %v1871 = vpack.c.b16 %v1483, %v1479
    %v1872 = vpack.c.b16 %v1484, %v1480
    %v1873 = vpack.c.b16 %v1485, %v1481
    %v1874 = vpack.c.b16 %v1490, %v1486
    %v1875 = vpack.c.b16 %v1491, %v1487
    %v1876 = vpack.c.b16 %v1492, %v1488
    %v1877 = vpack.c.b16 %v1493, %v1489
    %v1878 = vpack.c.b16 %v1498, %v1494
    %v1879 = vpack.c.b16 %v1499, %v1495
    %v1880 = vpack.c.b16 %v1500, %v1496
    %v1881 = vpack.c.b16 %v1501, %v1497
    %v1882 = vpack.c.b16 %v1506, %v1502
    %v1883 = vpack.c.b16 %v1507, %v1503
    %v1884 = vpack.c.b16 %v1508, %v1504
    %v1885 = vpack.c.b16 %v1509, %v1505
    %v1886 = vpack.c.b16 %v1514, %v1510
    %v1887 = vpack.c.b16 %v1515, %v1511
    %v1888 = vpack.c.b16 %v1516, %v1512
    %v1889 = vpack.c.b16 %v1517, %v1513
    %v1890 = vpack.c.b16 %v1522, %v1518
    %v1891 = vpack.c.b16 %v1523, %v1519
    %v1892 = vpack.c.b16 %v1524, %v1520
    %v1893 = vpack.c.b16 %v1525, %v1521
    %v1894 = vpack.c.b16 %v1530, %v1526
    %v1895 = vpack.c.b16 %v1531, %v1527
    %v1896 = vpack.c.b16 %v1532, %v1528
    %v1897 = vpack.c.b16 %v1533, %v1529
    %v1898 = vpack.c.b16 %v1538, %v1534
    %v1899 = vpack.c.b16 %v1539, %v1535
    %v1900 = vpack.c.b16 %v1540, %v1536
    %v1901 = vpack.c.b16 %v1541, %v1537
    %v1902 = vpack.c.b16 %v1546, %v1542
    %v1903 = vpack.c.b16 %v1547, %v1543
    %v1904 = vpack.c.b16 %v1548, %v1544
    %v1905 = vpack.c.b16 %v1549, %v1545
    %v1906 = vpack.c.b16 %v1554, %v1550
    %v1907 = vpack.c.b16 %v1555, %v1551
    %v1908 = vpack.c.b16 %v1556, %v1552
    %v1909 = vpack.c.b16 %v1557, %v1553
    %v1910 = vpack.c.b16 %v1562, %v1558
    %v1911 = vpack.c.b16 %v1563, %v1559
    %v1912 = vpack.c.b16 %v1564, %v1560
    %v1913 = vpack.c.b16 %v1565, %v1561
    %v1914 = vpack.c.b16 %v1570, %v1566
    %v1915 = vpack.c.b16 %v1571, %v1567
    %v1916 = vpack.c.b16 %v1572, %v1568
    %v1917 = vpack.c.b16 %v1573, %v1569
    %v1918 = vpack.c.b16 %v1578, %v1574
    %v1919 = vpack.c.b16 %v1579, %v1575
    %v1920 = vpack.c.b16 %v1580, %v1576
    %v1921 = vpack.c.b16 %v1581, %v1577
    %v1922 = vpack.c.b16 %v1586, %v1582
    %v1923 = vpack.c.b16 %v1587, %v1583
    %v1924 = vpack.c.b16 %v1588, %v1584
    %v1925 = vpack.c.b16 %v1589, %v1585
    %v1926 = vpack.c.b16 %v1594, %v1590
    %v1927 = vpack.c.b16 %v1595, %v1591
    %v1928 = vpack.c.b16 %v1596, %v1592
    %v1929 = vpack.c.b16 %v1597, %v1593
    %v1930 = vpack.c.b16 %v1602, %v1598
    %v1931 = vpack.c.b16 %v1603, %v1599
    %v1932 = vpack.c.b16 %v1604, %v1600
    %v1933 = vpack.c.b16 %v1605, %v1601
    %v1934 = vpack.c.b16 %v1610, %v1606
    %v1935 = vpack.c.b16 %v1611, %v1607
    %v1936 = vpack.c.b16 %v1612, %v1608
    %v1937 = vpack.c.b16 %v1613, %v1609
    %v1938 = vpack.c.b16 %v1618, %v1614
    %v1939 = vpack.c.b16 %v1619, %v1615
    %v1940 = vpack.c.b16 %v1620, %v1616
    %v1941 = vpack.c.b16 %v1621, %v1617
    %v1942 = vpack.c.b16 %v1626, %v1622
    %v1943 = vpack.c.b16 %v1627, %v1623
    %v1944 = vpack.c.b16 %v1628, %v1624
    %v1945 = vpack.c.b16 %v1629, %v1625
    %v1946 = vpack.c.b16 %v1634, %v1630
    %v1947 = vpack.c.b16 %v1635, %v1631
    %v1948 = vpack.c.b16 %v1636, %v1632
    %v1949 = vpack.c.b16 %v1637, %v1633
    %v1950 = vpack.c.b16 %v1642, %v1638
    %v1951 = vpack.c.b16 %v1643, %v1639
    %v1952 = vpack.c.b16 %v1644, %v1640
    %v1953 = vpack.c.b16 %v1645, %v1641
    %v1954 = vpack.c.b16 %v1650, %v1646
    %v1955 = vpack.c.b16 %v1651, %v1647
    %v1956 = vpack.c.b16 %v1652, %v1648
    %v1957 = vpack.c.b16 %v1653, %v1649
    %v1958 = vpack.c.b16 %v1658, %v1654
    %v1959 = vpack.c.b16 %v1659, %v1655
    %v1960 = vpack.c.b16 %v1660, %v1656
    %v1961 = vpack.c.b16 %v1661, %v1657
    %v1962 = vpack.c.b16 %v1666, %v1662
    %v1963 = vpack.c.b16 %v1667, %v1663
    %v1964 = vpack.c.b16 %v1668, %v1664
    %v1965 = vpack.c.b16 %v1669, %v1665
    %v1966 = vpack.c.b16 %v1674, %v1670
    %v1967 = vpack.c.b16 %v1675, %v1671
    %v1968 = vpack.c.b16 %v1676, %v1672
    %v1969 = vpack.c.b16 %v1677, %v1673
    %v1970 = vpack.c.b16 %v1682, %v1678
    %v1971 = vpack.c.b16 %v1683, %v1679
    %v1972 = vpack.c.b16 %v1684, %v1680
    %v1973 = vpack.c.b16 %v1685, %v1681
    %v1974 = vpack.c.b16 %v1690, %v1686
    %v1975 = vpack.c.b16 %v1691, %v1687
    %v1976 = vpack.c.b16 %v1692, %v1688
    %v1977 = vpack.c.b16 %v1693, %v1689
    %v1978 = vpack.c.b16 %v1698, %v1694
    %v1979 = vpack.c.b16 %v1699, %v1695
    %v1980 = vpack.c.b16 %v1700, %v1696
    %v1981 = vpack.c.b16 %v1701, %v1697
    %v1982 = vpack.c.b16 %v1706, %v1702
    %v1983 = vpack.c.b16 %v1707, %v1703
    %v1984 = vpack.c.b16 %v1708, %v1704
    %v1985 = vpack.c.b16 %v1709, %v1705
    %v1986 = vpack.c.b16 %v1714, %v1710
    %v1987 = vpack.c.b16 %v1715, %v1711
    %v1988 = vpack.c.b16 %v1716, %v1712
    %v1989 = vpack.c.b16 %v1717, %v1713
    %v1990 = vpack.c.b16 %v1722, %v1718
    %v1991 = vpack.c.b16 %v1723, %v1719
    %v1992 = vpack.c.b16 %v1724, %v1720
    %v1993 = vpack.c.b16 %v1725, %v1721
    %v1994 = vpack.c.b16 %v1730, %v1726
    %v1995 = vpack.c.b16 %v1731, %v1727
    %v1996 = vpack.c.b16 %v1732, %v1728
    %v1997 = vpack.c.b16 %v1733, %v1729
    %v1998 = vpack.c.b16 %v1738, %v1734
    %v1999 = vpack.c.b16 %v1739, %v1735
    %v2000 = vpack.c.b16 %v1740, %v1736
    %v2001 = vpack.c.b16 %v1741, %v1737
    %v2002 = vpack.c.b16 %v1746, %v1742
    %v2003 = vpack.c.b16 %v1747, %v1743
    %v2004 = vpack.c.b16 %v1748, %v1744
    %v2005 = vpack.c.b16 %v1749, %v1745
    %2262 = vmatprep.subr.bf16.mxu0 %v1751
    %2263 = vmatpush1.bf16.msra.mxu0 %v1750
    %2264 = vmatprep.subr.bf16.mxu0 %v1755
    %2265 = vmatpush1.bf16.msra.mxu0 %v1754
    %2266 = vmatprep.subr.bf16.mxu0 %v1759
    %2267 = vmatpush1.bf16.msra.mxu0 %v1758
    %2268 = vmatprep.subr.bf16.mxu0 %v1763
    %2269 = vmatpush1.bf16.msra.mxu0 %v1762
    %2270 = vmatprep.subr.bf16.mxu0 %v1767
    %2271 = vmatpush1.bf16.msra.mxu0 %v1766
    %2272 = vmatprep.subr.bf16.mxu0 %v1771
    %2273 = vmatpush1.bf16.msra.mxu0 %v1770
    %2274 = vmatprep.subr.bf16.mxu0 %v1775
    %2275 = vmatpush1.bf16.msra.mxu0 %v1774
    %2276 = vmatprep.subr.bf16.mxu0 %v1779
    %2277 = vmatpush1.bf16.msra.mxu0 %v1778
    %2278 = vmatprep.subr.bf16.mxu0 %v1783
    %2279 = vmatpush1.bf16.msra.mxu0 %v1782
    %2280 = vmatprep.subr.bf16.mxu0 %v1787
    %2281 = vmatpush1.bf16.msra.mxu0 %v1786
    %2282 = vmatprep.subr.bf16.mxu0 %v1791
    %2283 = vmatpush1.bf16.msra.mxu0 %v1790
    %2284 = vmatprep.subr.bf16.mxu0 %v1795
    %2285 = vmatpush1.bf16.msra.mxu0 %v1794
    %2286 = vmatprep.subr.bf16.mxu0 %v1799
    %2287 = vmatpush1.bf16.msra.mxu0 %v1798
    %2288 = vmatprep.subr.bf16.mxu0 %v1803
    %2289 = vmatpush1.bf16.msra.mxu0 %v1802
    %2290 = vmatprep.subr.bf16.mxu0 %v1807
    %2291 = vmatpush1.bf16.msra.mxu0 %v1806
    %2292 = vmatprep.subr.bf16.mxu0 %v1811
    %2293 = vmatpush1.bf16.msra.mxu0 %v1810
    %2294 = vmatprep.mubr.bf16.mxu0 %v698
    %2295 = vmatmul.mubr.bf16.gmra.mrb[0].mxu0 %v697
    %v2296 = vpop.f32.mrb[0].mxu0
    %v2297 = vadd.f32 %v965, %v2296
    %v2298 = vpop.f32.mrb[0].mxu0
    %v2299 = vadd.f32 %v969, %v2298
    %v2300 = vpop.f32.mrb[0].mxu0
    %v2301 = vpop.f32.mrb[0].mxu0
    %2302 = vdwg.mxu0
    %2303 = vmatprep.subr.bf16.mxu0 %v1815
    %2304 = vmatpush1.bf16.msra.mxu0 %v1814
    %2305 = vmatprep.subr.bf16.mxu0 %v1819
    %2306 = vmatpush1.bf16.msra.mxu0 %v1818
    %2307 = vmatprep.subr.bf16.mxu0 %v1823
    %2308 = vmatpush1.bf16.msra.mxu0 %v1822
    %2309 = vmatprep.subr.bf16.mxu0 %v1827
    %2310 = vmatpush1.bf16.msra.mxu0 %v1826
    %2311 = vmatprep.subr.bf16.mxu0 %v1831
    %2312 = vmatpush1.bf16.msra.mxu0 %v1830
    %2313 = vmatprep.subr.bf16.mxu0 %v1835
    %2314 = vmatpush1.bf16.msra.mxu0 %v1834
    %2315 = vmatprep.subr.bf16.mxu0 %v1839
    %2316 = vmatpush1.bf16.msra.mxu0 %v1838
    %2317 = vmatprep.subr.bf16.mxu0 %v1843
    %2318 = vmatpush1.bf16.msra.mxu0 %v1842
    %2319 = vmatprep.subr.bf16.mxu0 %v1847
    %2320 = vmatpush1.bf16.msra.mxu0 %v1846
    %2321 = vmatprep.subr.bf16.mxu0 %v1851
    %2322 = vmatpush1.bf16.msra.mxu0 %v1850
    %2323 = vmatprep.subr.bf16.mxu0 %v1855
    %2324 = vmatpush1.bf16.msra.mxu0 %v1854
    %2325 = vmatprep.subr.bf16.mxu0 %v1859
    %2326 = vmatpush1.bf16.msra.mxu0 %v1858
    %2327 = vmatprep.subr.bf16.mxu0 %v1863
    %2328 = vmatpush1.bf16.msra.mxu0 %v1862
    %2329 = vmatprep.subr.bf16.mxu0 %v1867
    %2330 = vmatpush1.bf16.msra.mxu0 %v1866
    %2331 = vmatprep.subr.bf16.mxu0 %v1871
    %2332 = vmatpush1.bf16.msra.mxu0 %v1870
    %2333 = vmatprep.subr.bf16.mxu0 %v1875
    %2334 = vmatpush1.bf16.msra.mxu0 %v1874
    %2335 = vmatprep.mubr.bf16.mxu0 %v700
    %2336 = vmatmul.mubr.bf16.gmra.mrb[0].mxu0 %v699
    %v2337 = vpop.f32.mrb[0].mxu0
    %v2338 = vadd.f32 %v2297, %v2337
    %v2339 = vpop.f32.mrb[0].mxu0
    %v2340 = vadd.f32 %v2299, %v2339
    %v2341 = vpop.f32.mrb[0].mxu0
    %v2342 = vpop.f32.mrb[0].mxu0
    %2343 = vdwg.mxu0
    %2344 = vmatprep.subr.bf16.mxu0 %v1879
    %2345 = vmatpush1.bf16.msra.mxu0 %v1878
    %2346 = vmatprep.subr.bf16.mxu0 %v1883
    %2347 = vmatpush1.bf16.msra.mxu0 %v1882
    %2348 = vmatprep.subr.bf16.mxu0 %v1887
    %2349 = vmatpush1.bf16.msra.mxu0 %v1886
    %2350 = vmatprep.subr.bf16.mxu0 %v1891
    %2351 = vmatpush1.bf16.msra.mxu0 %v1890
    %2352 = vmatprep.subr.bf16.mxu0 %v1895
    %2353 = vmatpush1.bf16.msra.mxu0 %v1894
    %2354 = vmatprep.subr.bf16.mxu0 %v1899
    %2355 = vmatpush1.bf16.msra.mxu0 %v1898
    %2356 = vmatprep.subr.bf16.mxu0 %v1903
    %2357 = vmatpush1.bf16.msra.mxu0 %v1902
    %2358 = vmatprep.subr.bf16.mxu0 %v1907
    %2359 = vmatpush1.bf16.msra.mxu0 %v1906
    %2360 = vmatprep.subr.bf16.mxu0 %v1911
    %2361 = vmatpush1.bf16.msra.mxu0 %v1910
    %2362 = vmatprep.subr.bf16.mxu0 %v1915
    %2363 = vmatpush1.bf16.msra.mxu0 %v1914
    %2364 = vmatprep.subr.bf16.mxu0 %v1919
    %2365 = vmatpush1.bf16.msra.mxu0 %v1918
    %2366 = vmatprep.subr.bf16.mxu0 %v1923
    %2367 = vmatpush1.bf16.msra.mxu0 %v1922
    %2368 = vmatprep.subr.bf16.mxu0 %v1927
    %2369 = vmatpush1.bf16.msra.mxu0 %v1926
    %2370 = vmatprep.subr.bf16.mxu0 %v1931
    %2371 = vmatpush1.bf16.msra.mxu0 %v1930
    %2372 = vmatprep.subr.bf16.mxu0 %v1935
    %2373 = vmatpush1.bf16.msra.mxu0 %v1934
    %2374 = vmatprep.subr.bf16.mxu0 %v1939
    %2375 = vmatpush1.bf16.msra.mxu0 %v1938
    %2376 = vmatprep.mubr.bf16.mxu0 %v702
    %2377 = vmatmul.mubr.bf16.gmra.mrb[0].mxu0 %v701
    %v2378 = vpop.f32.mrb[0].mxu0
    %v2379 = vadd.f32 %v2338, %v2378
    %v2380 = vpop.f32.mrb[0].mxu0
    %v2381 = vadd.f32 %v2340, %v2380
    %v2382 = vpop.f32.mrb[0].mxu0
    %v2383 = vpop.f32.mrb[0].mxu0
    %2384 = vdwg.mxu0
    %2385 = vmatprep.subr.bf16.mxu0 %v1943
    %2386 = vmatpush1.bf16.msra.mxu0 %v1942
    %2387 = vmatprep.subr.bf16.mxu0 %v1947
    %2388 = vmatpush1.bf16.msra.mxu0 %v1946
    %2389 = vmatprep.subr.bf16.mxu0 %v1951
    %2390 = vmatpush1.bf16.msra.mxu0 %v1950
    %2391 = vmatprep.subr.bf16.mxu0 %v1955
    %2392 = vmatpush1.bf16.msra.mxu0 %v1954
    %2393 = vmatprep.subr.bf16.mxu0 %v1959
    %2394 = vmatpush1.bf16.msra.mxu0 %v1958
    %2395 = vmatprep.subr.bf16.mxu0 %v1963
    %2396 = vmatpush1.bf16.msra.mxu0 %v1962
    %2397 = vmatprep.subr.bf16.mxu0 %v1967
    %2398 = vmatpush1.bf16.msra.mxu0 %v1966
    %2399 = vmatprep.subr.bf16.mxu0 %v1971
    %2400 = vmatpush1.bf16.msra.mxu0 %v1970
    %2401 = vmatprep.subr.bf16.mxu0 %v1975
    %2402 = vmatpush1.bf16.msra.mxu0 %v1974
    %2403 = vmatprep.subr.bf16.mxu0 %v1979
    %2404 = vmatpush1.bf16.msra.mxu0 %v1978
    %2405 = vmatprep.subr.bf16.mxu0 %v1983
    %2406 = vmatpush1.bf16.msra.mxu0 %v1982
    %2407 = vmatprep.subr.bf16.mxu0 %v1987
    %2408 = vmatpush1.bf16.msra.mxu0 %v1986
    %2409 = vmatprep.subr.bf16.mxu0 %v1991
    %2410 = vmatpush1.bf16.msra.mxu0 %v1990
    %2411 = vmatprep.subr.bf16.mxu0 %v1995
    %2412 = vmatpush1.bf16.msra.mxu0 %v1994
    %2413 = vmatprep.subr.bf16.mxu0 %v1999
    %2414 = vmatpush1.bf16.msra.mxu0 %v1998
    %2415 = vmatprep.subr.bf16.mxu0 %v2003
    %2416 = vmatpush1.bf16.msra.mxu0 %v2002
    %2417 = vmatprep.mubr.bf16.mxu0 %v704
    %2418 = vmatmul.mubr.bf16.gmra.mrb[0].mxu0 %v703
    %v2419 = vpop.f32.mrb[0].mxu0
    %v2420 = vadd.f32 %v2379, %v2419
    %v2421 = vpop.f32.mrb[0].mxu0
    %v2422 = vadd.f32 %v2381, %v2421
    %v2423 = vpop.f32.mrb[0].mxu0
    %v2424 = vpop.f32.mrb[0].mxu0
    %2425 = vdwg.mxu0
    %2426 = vmatprep.subr.bf16.mxu0 %v1753
    %2427 = vmatpush1.bf16.msra.mxu0 %v1752
    %2428 = vmatprep.subr.bf16.mxu0 %v1757
    %2429 = vmatpush1.bf16.msra.mxu0 %v1756
    %2430 = vmatprep.subr.bf16.mxu0 %v1761
    %2431 = vmatpush1.bf16.msra.mxu0 %v1760
    %2432 = vmatprep.subr.bf16.mxu0 %v1765
    %2433 = vmatpush1.bf16.msra.mxu0 %v1764
    %2434 = vmatprep.subr.bf16.mxu0 %v1769
    %2435 = vmatpush1.bf16.msra.mxu0 %v1768
    %2436 = vmatprep.subr.bf16.mxu0 %v1773
    %2437 = vmatpush1.bf16.msra.mxu0 %v1772
    %2438 = vmatprep.subr.bf16.mxu0 %v1777
    %2439 = vmatpush1.bf16.msra.mxu0 %v1776
    %2440 = vmatprep.subr.bf16.mxu0 %v1781
    %2441 = vmatpush1.bf16.msra.mxu0 %v1780
    %2442 = vmatprep.subr.bf16.mxu0 %v1785
    %2443 = vmatpush1.bf16.msra.mxu0 %v1784
    %2444 = vmatprep.subr.bf16.mxu0 %v1789
    %2445 = vmatpush1.bf16.msra.mxu0 %v1788
    %2446 = vmatprep.subr.bf16.mxu0 %v1793
    %2447 = vmatpush1.bf16.msra.mxu0 %v1792
    %2448 = vmatprep.subr.bf16.mxu0 %v1797
    %2449 = vmatpush1.bf16.msra.mxu0 %v1796
    %2450 = vmatprep.subr.bf16.mxu0 %v1801
    %2451 = vmatpush1.bf16.msra.mxu0 %v1800
    %2452 = vmatprep.subr.bf16.mxu0 %v1805
    %2453 = vmatpush1.bf16.msra.mxu0 %v1804
    %2454 = vmatprep.subr.bf16.mxu0 %v1809
    %2455 = vmatpush1.bf16.msra.mxu0 %v1808
    %2456 = vmatprep.subr.bf16.mxu0 %v1813
    %2457 = vmatpush1.bf16.msra.mxu0 %v1812
    %2458 = vmatprep.mubr.bf16.mxu0 %v698
    %2459 = vmatmul.mubr.bf16.gmra.mrb[0].mxu0 %v697
    %v2460 = vpop.f32.mrb[0].mxu0
    %v2461 = vadd.f32 %v973, %v2460
    %v2462 = vpop.f32.mrb[0].mxu0
    %v2463 = vadd.f32 %v977, %v2462
    %v2464 = vpop.f32.mrb[0].mxu0
    %v2465 = vpop.f32.mrb[0].mxu0
    %2466 = vdwg.mxu0
    %2467 = vmatprep.subr.bf16.mxu0 %v1817
    %2468 = vmatpush1.bf16.msra.mxu0 %v1816
    %2469 = vmatprep.subr.bf16.mxu0 %v1821
    %2470 = vmatpush1.bf16.msra.mxu0 %v1820
    %2471 = vmatprep.subr.bf16.mxu0 %v1825
    %2472 = vmatpush1.bf16.msra.mxu0 %v1824
    %2473 = vmatprep.subr.bf16.mxu0 %v1829
    %2474 = vmatpush1.bf16.msra.mxu0 %v1828
    %2475 = vmatprep.subr.bf16.mxu0 %v1833
    %2476 = vmatpush1.bf16.msra.mxu0 %v1832
    %2477 = vmatprep.subr.bf16.mxu0 %v1837
    %2478 = vmatpush1.bf16.msra.mxu0 %v1836
    %2479 = vmatprep.subr.bf16.mxu0 %v1841
    %2480 = vmatpush1.bf16.msra.mxu0 %v1840
    %2481 = vmatprep.subr.bf16.mxu0 %v1845
    %2482 = vmatpush1.bf16.msra.mxu0 %v1844
    %2483 = vmatprep.subr.bf16.mxu0 %v1849
    %2484 = vmatpush1.bf16.msra.mxu0 %v1848
    %2485 = vmatprep.subr.bf16.mxu0 %v1853
    %2486 = vmatpush1.bf16.msra.mxu0 %v1852
    %2487 = vmatprep.subr.bf16.mxu0 %v1857
    %2488 = vmatpush1.bf16.msra.mxu0 %v1856
    %2489 = vmatprep.subr.bf16.mxu0 %v1861
    %2490 = vmatpush1.bf16.msra.mxu0 %v1860
    %2491 = vmatprep.subr.bf16.mxu0 %v1865
    %2492 = vmatpush1.bf16.msra.mxu0 %v1864
    %2493 = vmatprep.subr.bf16.mxu0 %v1869
    %2494 = vmatpush1.bf16.msra.mxu0 %v1868
    %2495 = vmatprep.subr.bf16.mxu0 %v1873
    %2496 = vmatpush1.bf16.msra.mxu0 %v1872
    %2497 = vmatprep.subr.bf16.mxu0 %v1877
    %2498 = vmatpush1.bf16.msra.mxu0 %v1876
    %2499 = vmatprep.mubr.bf16.mxu0 %v700
    %2500 = vmatmul.mubr.bf16.gmra.mrb[0].mxu0 %v699
    %v2501 = vpop.f32.mrb[0].mxu0
    %v2502 = vadd.f32 %v2461, %v2501
    %v2503 = vpop.f32.mrb[0].mxu0
    %v2504 = vadd.f32 %v2463, %v2503
    %v2505 = vpop.f32.mrb[0].mxu0
    %v2506 = vpop.f32.mrb[0].mxu0
    %2507 = vdwg.mxu0
    %2508 = vmatprep.subr.bf16.mxu0 %v1881
    %2509 = vmatpush1.bf16.msra.mxu0 %v1880
    %2510 = vmatprep.subr.bf16.mxu0 %v1885
    %2511 = vmatpush1.bf16.msra.mxu0 %v1884
    %2512 = vmatprep.subr.bf16.mxu0 %v1889
    %2513 = vmatpush1.bf16.msra.mxu0 %v1888
    %2514 = vmatprep.subr.bf16.mxu0 %v1893
    %2515 = vmatpush1.bf16.msra.mxu0 %v1892
    %2516 = vmatprep.subr.bf16.mxu0 %v1897
    %2517 = vmatpush1.bf16.msra.mxu0 %v1896
    %2518 = vmatprep.subr.bf16.mxu0 %v1901
    %2519 = vmatpush1.bf16.msra.mxu0 %v1900
    %2520 = vmatprep.subr.bf16.mxu0 %v1905
    %2521 = vmatpush1.bf16.msra.mxu0 %v1904
    %2522 = vmatprep.subr.bf16.mxu0 %v1909
    %2523 = vmatpush1.bf16.msra.mxu0 %v1908
    %2524 = vmatprep.subr.bf16.mxu0 %v1913
    %2525 = vmatpush1.bf16.msra.mxu0 %v1912
    %2526 = vmatprep.subr.bf16.mxu0 %v1917
    %2527 = vmatpush1.bf16.msra.mxu0 %v1916
    %2528 = vmatprep.subr.bf16.mxu0 %v1921
    %2529 = vmatpush1.bf16.msra.mxu0 %v1920
    %2530 = vmatprep.subr.bf16.mxu0 %v1925
    %2531 = vmatpush1.bf16.msra.mxu0 %v1924
    %2532 = vmatprep.subr.bf16.mxu0 %v1929
    %2533 = vmatpush1.bf16.msra.mxu0 %v1928
    %2534 = vmatprep.subr.bf16.mxu0 %v1933
    %2535 = vmatpush1.bf16.msra.mxu0 %v1932
    %2536 = vmatprep.subr.bf16.mxu0 %v1937
    %2537 = vmatpush1.bf16.msra.mxu0 %v1936
    %2538 = vmatprep.subr.bf16.mxu0 %v1941
    %2539 = vmatpush1.bf16.msra.mxu0 %v1940
    %2540 = vmatprep.mubr.bf16.mxu0 %v702
    %2541 = vmatmul.mubr.bf16.gmra.mrb[0].mxu0 %v701
    %v2542 = vpop.f32.mrb[0].mxu0
    %v2543 = vadd.f32 %v2502, %v2542
    %v2544 = vpop.f32.mrb[0].mxu0
    %v2545 = vadd.f32 %v2504, %v2544
    %v2546 = vpop.f32.mrb[0].mxu0
    %v2547 = vpop.f32.mrb[0].mxu0
    %2548 = vdwg.mxu0
    %2549 = vmatprep.subr.bf16.mxu0 %v1945
    %2550 = vmatpush1.bf16.msra.mxu0 %v1944
    %2551 = vmatprep.subr.bf16.mxu0 %v1949
    %2552 = vmatpush1.bf16.msra.mxu0 %v1948
    %2553 = vmatprep.subr.bf16.mxu0 %v1953
    %2554 = vmatpush1.bf16.msra.mxu0 %v1952
    %2555 = vmatprep.subr.bf16.mxu0 %v1957
    %2556 = vmatpush1.bf16.msra.mxu0 %v1956
    %2557 = vmatprep.subr.bf16.mxu0 %v1961
    %2558 = vmatpush1.bf16.msra.mxu0 %v1960
    %2559 = vmatprep.subr.bf16.mxu0 %v1965
    %2560 = vmatpush1.bf16.msra.mxu0 %v1964
    %2561 = vmatprep.subr.bf16.mxu0 %v1969
    %2562 = vmatpush1.bf16.msra.mxu0 %v1968
    %2563 = vmatprep.subr.bf16.mxu0 %v1973
    %2564 = vmatpush1.bf16.msra.mxu0 %v1972
    %2565 = vmatprep.subr.bf16.mxu0 %v1977
    %2566 = vmatpush1.bf16.msra.mxu0 %v1976
    %2567 = vmatprep.subr.bf16.mxu0 %v1981
    %2568 = vmatpush1.bf16.msra.mxu0 %v1980
    %2569 = vmatprep.subr.bf16.mxu0 %v1985
    %2570 = vmatpush1.bf16.msra.mxu0 %v1984
    %2571 = vmatprep.subr.bf16.mxu0 %v1989
    %2572 = vmatpush1.bf16.msra.mxu0 %v1988
    %2573 = vmatprep.subr.bf16.mxu0 %v1993
    %2574 = vmatpush1.bf16.msra.mxu0 %v1992
    %2575 = vmatprep.subr.bf16.mxu0 %v1997
    %2576 = vmatpush1.bf16.msra.mxu0 %v1996
    %2577 = vmatprep.subr.bf16.mxu0 %v2001
    %2578 = vmatpush1.bf16.msra.mxu0 %v2000
    %2579 = vmatprep.subr.bf16.mxu0 %v2005
    %2580 = vmatpush1.bf16.msra.mxu0 %v2004
    %2581 = vmatprep.mubr.bf16.mxu0 %v704
    %2582 = vmatmul.mubr.bf16.gmra.mrb[0].mxu0 %v703
    %v2583 = vpop.f32.mrb[0].mxu0
    %v2584 = vadd.f32 %v2543, %v2583
    %v2585 = vpop.f32.mrb[0].mxu0
    %v2586 = vadd.f32 %v2545, %v2585
    %v2587 = vpop.f32.mrb[0].mxu0
    %v2588 = vpop.f32.mrb[0].mxu0
    %2589 = vdwg.mxu0
    %v2590 = vmax.f32 %v2420, 0.0
    %v2591 = vmax.f32 %v2422, 0.0
    %v2592 = vmax.f32 %v2584, 0.0
    %v2593 = vmax.f32 %v2586, 0.0
    %v2594 = vld [vmem:[%s6 + $0xc] sm:$0x3]
    %v2595 = vpack.c.bf16 %v2590, %v2590
    %v2596 = vpack.c.bf16 %v2591, %v2591
    %v2597 = vpack.c.bf16 %v2592, %v2592
    %v2598 = vpack.c.bf16 %v2593, %v2593
    %v2599 = vld [vmem:[#allocation7] sm:$0xff]
    %v2600 = vld [vmem:[#allocation7 + $0x8] sm:$0xff]
    %v2601 = vld [vmem:[#allocation7 + $0x10] sm:$0xff]
    %v2602 = vld [vmem:[#allocation7 + $0x18] sm:$0xff]
    %v2603 = vld [vmem:[#allocation7 + $0x20] sm:$0xff]
    %v2604 = vld [vmem:[#allocation7 + $0x28] sm:$0xff]
    %v2605 = vld [vmem:[#allocation7 + $0x30] sm:$0xff]
    %v2606 = vld [vmem:[#allocation7 + $0x38] sm:$0xff]
    %v2607 = vld [vmem:[#allocation7 + $0x40] sm:$0xff]
    %v2608 = vld [vmem:[#allocation7 + $0x48] sm:$0xff]
    %v2609 = vld [vmem:[#allocation7 + $0x50] sm:$0xff]
    %v2610 = vld [vmem:[#allocation7 + $0x58] sm:$0xff]
    %v2611 = vld [vmem:[#allocation7 + $0x60] sm:$0xff]
    %v2612 = vld [vmem:[#allocation7 + $0x68] sm:$0xff]
    %v2613 = vld [vmem:[#allocation7 + $0x70] sm:$0xff]
    %v2614 = vld [vmem:[#allocation7 + $0x78] sm:$0xff]
    %v2615 = vld [vmem:[#allocation7 + $0x80] sm:$0xff]
    %v2616 = vld [vmem:[#allocation7 + $0x88] sm:$0xff]
    %v2617 = vld [vmem:[#allocation7 + $0x90] sm:$0xff]
    %v2618 = vld [vmem:[#allocation7 + $0x98] sm:$0xff]
    %v2619 = vld [vmem:[#allocation7 + $0xa0] sm:$0xff]
    %v2620 = vld [vmem:[#allocation7 + $0xa8] sm:$0xff]
    %v2621 = vld [vmem:[#allocation7 + $0xb0] sm:$0xff]
    %v2622 = vld [vmem:[#allocation7 + $0xb8] sm:$0xff]
    %v2623 = vld [vmem:[#allocation7 + $0xc0] sm:$0xff]
    %v2624 = vld [vmem:[#allocation7 + $0xc8] sm:$0xff]
    %v2625 = vld [vmem:[#allocation7 + $0xd0] sm:$0xff]
    %v2626 = vld [vmem:[#allocation7 + $0xd8] sm:$0xff]
    %v2627 = vld [vmem:[#allocation7 + $0xe0] sm:$0xff]
    %v2628 = vld [vmem:[#allocation7 + $0xe8] sm:$0xff]
    %v2629 = vld [vmem:[#allocation7 + $0xf0] sm:$0xff]
    %v2630 = vld [vmem:[#allocation7 + $0xf8] sm:$0xff]
    %v2631 = vld [vmem:[#allocation7 + $0x100] sm:$0xff]
    %v2632 = vld [vmem:[#allocation7 + $0x108] sm:$0xff]
    %v2633 = vld [vmem:[#allocation7 + $0x110] sm:$0xff]
    %v2634 = vld [vmem:[#allocation7 + $0x118] sm:$0xff]
    %v2635 = vld [vmem:[#allocation7 + $0x120] sm:$0xff]
    %v2636 = vld [vmem:[#allocation7 + $0x128] sm:$0xff]
    %v2637 = vld [vmem:[#allocation7 + $0x130] sm:$0xff]
    %v2638 = vld [vmem:[#allocation7 + $0x138] sm:$0xff]
    %v2639 = vld [vmem:[#allocation7 + $0x140] sm:$0xff]
    %v2640 = vld [vmem:[#allocation7 + $0x148] sm:$0xff]
    %v2641 = vld [vmem:[#allocation7 + $0x150] sm:$0xff]
    %v2642 = vld [vmem:[#allocation7 + $0x158] sm:$0xff]
    %v2643 = vld [vmem:[#allocation7 + $0x160] sm:$0xff]
    %v2644 = vld [vmem:[#allocation7 + $0x168] sm:$0xff]
    %v2645 = vld [vmem:[#allocation7 + $0x170] sm:$0xff]
    %v2646 = vld [vmem:[#allocation7 + $0x178] sm:$0xff]
    %v2647 = vld [vmem:[#allocation7 + $0x180] sm:$0xff]
    %v2648 = vld [vmem:[#allocation7 + $0x188] sm:$0xff]
    %v2649 = vld [vmem:[#allocation7 + $0x190] sm:$0xff]
    %v2650 = vld [vmem:[#allocation7 + $0x198] sm:$0xff]
    %v2651 = vld [vmem:[#allocation7 + $0x1a0] sm:$0xff]
    %v2652 = vld [vmem:[#allocation7 + $0x1a8] sm:$0xff]
    %v2653 = vld [vmem:[#allocation7 + $0x1b0] sm:$0xff]
    %v2654 = vld [vmem:[#allocation7 + $0x1b8] sm:$0xff]
    %v2655 = vld [vmem:[#allocation7 + $0x1c0] sm:$0xff]
    %v2656 = vld [vmem:[#allocation7 + $0x1c8] sm:$0xff]
    %v2657 = vld [vmem:[#allocation7 + $0x1d0] sm:$0xff]
    %v2658 = vld [vmem:[#allocation7 + $0x1d8] sm:$0xff]
    %v2659 = vld [vmem:[#allocation7 + $0x1e0] sm:$0xff]
    %v2660 = vld [vmem:[#allocation7 + $0x1e8] sm:$0xff]
    %v2661 = vld [vmem:[#allocation7 + $0x1f0] sm:$0xff]
    %v2662 = vld [vmem:[#allocation7 + $0x1f8] sm:$0xff]
    %v2664 = vlaneseq
    %v2665 = vshrl.u32 %v2664, 7
    %v2666 = vsub.s32 0, %v2665
    %v2667 = vrot.slane %v2594, %v2666
    %v2668 = vlaneseq
    %v2669 = vshrl.u32 %v2668, 7
    %v2670 = vsub.s32 1, %v2669
    %v2671 = vrot.slane %v2594, %v2670
    %v2738 = vunpack.c.l.b16 %v2599
    %v2739 = vunpack.c.h.b16 %v2599
    %v2740 = vunpack.c.l.b16 %v2600
    %v2741 = vunpack.c.h.b16 %v2600
    %v2742 = vunpack.c.l.b16 %v2601
    %v2743 = vunpack.c.h.b16 %v2601
    %v2744 = vunpack.c.l.b16 %v2602
    %v2745 = vunpack.c.h.b16 %v2602
    %v2746 = vunpack.c.l.b16 %v2603
    %v2747 = vunpack.c.h.b16 %v2603
    %v2748 = vunpack.c.l.b16 %v2604
    %v2749 = vunpack.c.h.b16 %v2604
    %v2750 = vunpack.c.l.b16 %v2605
    %v2751 = vunpack.c.h.b16 %v2605
    %v2752 = vunpack.c.l.b16 %v2606
    %v2753 = vunpack.c.h.b16 %v2606
    %v2754 = vunpack.c.l.b16 %v2607
    %v2755 = vunpack.c.h.b16 %v2607
    %v2756 = vunpack.c.l.b16 %v2608
    %v2757 = vunpack.c.h.b16 %v2608
    %v2758 = vunpack.c.l.b16 %v2609
    %v2759 = vunpack.c.h.b16 %v2609
    %v2760 = vunpack.c.l.b16 %v2610
    %v2761 = vunpack.c.h.b16 %v2610
    %v2762 = vunpack.c.l.b16 %v2611
    %v2763 = vunpack.c.h.b16 %v2611
    %v2764 = vunpack.c.l.b16 %v2612
    %v2765 = vunpack.c.h.b16 %v2612
    %v2766 = vunpack.c.l.b16 %v2613
    %v2767 = vunpack.c.h.b16 %v2613
    %v2768 = vunpack.c.l.b16 %v2614
    %v2769 = vunpack.c.h.b16 %v2614
    %v2770 = vunpack.c.l.b16 %v2615
    %v2771 = vunpack.c.h.b16 %v2615
    %v2772 = vunpack.c.l.b16 %v2616
    %v2773 = vunpack.c.h.b16 %v2616
    %v2774 = vunpack.c.l.b16 %v2617
    %v2775 = vunpack.c.h.b16 %v2617
    %v2776 = vunpack.c.l.b16 %v2618
    %v2777 = vunpack.c.h.b16 %v2618
    %v2778 = vunpack.c.l.b16 %v2619
    %v2779 = vunpack.c.h.b16 %v2619
    %v2780 = vunpack.c.l.b16 %v2620
    %v2781 = vunpack.c.h.b16 %v2620
    %v2782 = vunpack.c.l.b16 %v2621
    %v2783 = vunpack.c.h.b16 %v2621
    %v2784 = vunpack.c.l.b16 %v2622
    %v2785 = vunpack.c.h.b16 %v2622
    %v2786 = vunpack.c.l.b16 %v2623
    %v2787 = vunpack.c.h.b16 %v2623
    %v2788 = vunpack.c.l.b16 %v2624
    %v2789 = vunpack.c.h.b16 %v2624
    %v2790 = vunpack.c.l.b16 %v2625
    %v2791 = vunpack.c.h.b16 %v2625
    %v2792 = vunpack.c.l.b16 %v2626
    %v2793 = vunpack.c.h.b16 %v2626
    %v2794 = vunpack.c.l.b16 %v2627
    %v2795 = vunpack.c.h.b16 %v2627
    %v2796 = vunpack.c.l.b16 %v2628
    %v2797 = vunpack.c.h.b16 %v2628
    %v2798 = vunpack.c.l.b16 %v2629
    %v2799 = vunpack.c.h.b16 %v2629
    %v2800 = vunpack.c.l.b16 %v2630
    %v2801 = vunpack.c.h.b16 %v2630
    %v2802 = vunpack.c.l.b16 %v2631
    %v2803 = vunpack.c.h.b16 %v2631
    %v2804 = vunpack.c.l.b16 %v2632
    %v2805 = vunpack.c.h.b16 %v2632
    %v2806 = vunpack.c.l.b16 %v2633
    %v2807 = vunpack.c.h.b16 %v2633
    %v2808 = vunpack.c.l.b16 %v2634
    %v2809 = vunpack.c.h.b16 %v2634
    %v2810 = vunpack.c.l.b16 %v2635
    %v2811 = vunpack.c.h.b16 %v2635
    %v2812 = vunpack.c.l.b16 %v2636
    %v2813 = vunpack.c.h.b16 %v2636
    %v2814 = vunpack.c.l.b16 %v2637
    %v2815 = vunpack.c.h.b16 %v2637
    %v2816 = vunpack.c.l.b16 %v2638
    %v2817 = vunpack.c.h.b16 %v2638
    %v2818 = vunpack.c.l.b16 %v2639
    %v2819 = vunpack.c.h.b16 %v2639
    %v2820 = vunpack.c.l.b16 %v2640
    %v2821 = vunpack.c.h.b16 %v2640
    %v2822 = vunpack.c.l.b16 %v2641
    %v2823 = vunpack.c.h.b16 %v2641
    %v2824 = vunpack.c.l.b16 %v2642
    %v2825 = vunpack.c.h.b16 %v2642
    %v2826 = vunpack.c.l.b16 %v2643
    %v2827 = vunpack.c.h.b16 %v2643
    %v2828 = vunpack.c.l.b16 %v2644
    %v2829 = vunpack.c.h.b16 %v2644
    %v2830 = vunpack.c.l.b16 %v2645
    %v2831 = vunpack.c.h.b16 %v2645
    %v2832 = vunpack.c.l.b16 %v2646
    %v2833 = vunpack.c.h.b16 %v2646
    %v2834 = vunpack.c.l.b16 %v2647
    %v2835 = vunpack.c.h.b16 %v2647
    %v2836 = vunpack.c.l.b16 %v2648
    %v2837 = vunpack.c.h.b16 %v2648
    %v2838 = vunpack.c.l.b16 %v2649
    %v2839 = vunpack.c.h.b16 %v2649
    %v2840 = vunpack.c.l.b16 %v2650
    %v2841 = vunpack.c.h.b16 %v2650
    %v2842 = vunpack.c.l.b16 %v2651
    %v2843 = vunpack.c.h.b16 %v2651
    %v2844 = vunpack.c.l.b16 %v2652
    %v2845 = vunpack.c.h.b16 %v2652
    %v2846 = vunpack.c.l.b16 %v2653
    %v2847 = vunpack.c.h.b16 %v2653
    %v2848 = vunpack.c.l.b16 %v2654
    %v2849 = vunpack.c.h.b16 %v2654
    %v2850 = vunpack.c.l.b16 %v2655
    %v2851 = vunpack.c.h.b16 %v2655
    %v2852 = vunpack.c.l.b16 %v2656
    %v2853 = vunpack.c.h.b16 %v2656
    %v2854 = vunpack.c.l.b16 %v2657
    %v2855 = vunpack.c.h.b16 %v2657
    %v2856 = vunpack.c.l.b16 %v2658
    %v2857 = vunpack.c.h.b16 %v2658
    %v2858 = vunpack.c.l.b16 %v2659
    %v2859 = vunpack.c.h.b16 %v2659
    %v2860 = vunpack.c.l.b16 %v2660
    %v2861 = vunpack.c.h.b16 %v2660
    %v2862 = vunpack.c.l.b16 %v2661
    %v2863 = vunpack.c.h.b16 %v2661
    %v2864 = vunpack.c.l.b16 %v2662
    %v2865 = vunpack.c.h.b16 %v2662
    %v2866 = vpack.c.b16 %v2740, %v2738
    %v2867 = vpack.c.b16 %v2741, %v2739
    %v2868 = vpack.c.b16 %v2744, %v2742
    %v2869 = vpack.c.b16 %v2745, %v2743
    %v2870 = vpack.c.b16 %v2748, %v2746
    %v2871 = vpack.c.b16 %v2749, %v2747
    %v2872 = vpack.c.b16 %v2752, %v2750
    %v2873 = vpack.c.b16 %v2753, %v2751
    %v2874 = vpack.c.b16 %v2756, %v2754
    %v2875 = vpack.c.b16 %v2757, %v2755
    %v2876 = vpack.c.b16 %v2760, %v2758
    %v2877 = vpack.c.b16 %v2761, %v2759
    %v2878 = vpack.c.b16 %v2764, %v2762
    %v2879 = vpack.c.b16 %v2765, %v2763
    %v2880 = vpack.c.b16 %v2768, %v2766
    %v2881 = vpack.c.b16 %v2769, %v2767
    %v2882 = vpack.c.b16 %v2772, %v2770
    %v2883 = vpack.c.b16 %v2773, %v2771
    %v2884 = vpack.c.b16 %v2776, %v2774
    %v2885 = vpack.c.b16 %v2777, %v2775
    %v2886 = vpack.c.b16 %v2780, %v2778
    %v2887 = vpack.c.b16 %v2781, %v2779
    %v2888 = vpack.c.b16 %v2784, %v2782
    %v2889 = vpack.c.b16 %v2785, %v2783
    %v2890 = vpack.c.b16 %v2788, %v2786
    %v2891 = vpack.c.b16 %v2789, %v2787
    %v2892 = vpack.c.b16 %v2792, %v2790
    %v2893 = vpack.c.b16 %v2793, %v2791
    %v2894 = vpack.c.b16 %v2796, %v2794
    %v2895 = vpack.c.b16 %v2797, %v2795
    %v2896 = vpack.c.b16 %v2800, %v2798
    %v2897 = vpack.c.b16 %v2801, %v2799
    %v2898 = vpack.c.b16 %v2804, %v2802
    %v2899 = vpack.c.b16 %v2805, %v2803
    %v2900 = vpack.c.b16 %v2808, %v2806
    %v2901 = vpack.c.b16 %v2809, %v2807
    %v2902 = vpack.c.b16 %v2812, %v2810
    %v2903 = vpack.c.b16 %v2813, %v2811
    %v2904 = vpack.c.b16 %v2816, %v2814
    %v2905 = vpack.c.b16 %v2817, %v2815
    %v2906 = vpack.c.b16 %v2820, %v2818
    %v2907 = vpack.c.b16 %v2821, %v2819
    %v2908 = vpack.c.b16 %v2824, %v2822
    %v2909 = vpack.c.b16 %v2825, %v2823
    %v2910 = vpack.c.b16 %v2828, %v2826
    %v2911 = vpack.c.b16 %v2829, %v2827
    %v2912 = vpack.c.b16 %v2832, %v2830
    %v2913 = vpack.c.b16 %v2833, %v2831
    %v2914 = vpack.c.b16 %v2836, %v2834
    %v2915 = vpack.c.b16 %v2837, %v2835
    %v2916 = vpack.c.b16 %v2840, %v2838
    %v2917 = vpack.c.b16 %v2841, %v2839
    %v2918 = vpack.c.b16 %v2844, %v2842
    %v2919 = vpack.c.b16 %v2845, %v2843
    %v2920 = vpack.c.b16 %v2848, %v2846
    %v2921 = vpack.c.b16 %v2849, %v2847
    %v2922 = vpack.c.b16 %v2852, %v2850
    %v2923 = vpack.c.b16 %v2853, %v2851
    %v2924 = vpack.c.b16 %v2856, %v2854
    %v2925 = vpack.c.b16 %v2857, %v2855
    %v2926 = vpack.c.b16 %v2860, %v2858
    %v2927 = vpack.c.b16 %v2861, %v2859
    %v2928 = vpack.c.b16 %v2864, %v2862
    %v2929 = vpack.c.b16 %v2865, %v2863
    %2994 = vmatprep.subr.bf16.mxu0 %v2867
    %2995 = vmatpush1.bf16.msra.mxu0 %v2866
    %2996 = vmatprep.subr.bf16.mxu0 %v2869
    %2997 = vmatpush1.bf16.msra.mxu0 %v2868
    %2998 = vmatprep.subr.bf16.mxu0 %v2871
    %2999 = vmatpush1.bf16.msra.mxu0 %v2870
    %3000 = vmatprep.subr.bf16.mxu0 %v2873
    %3001 = vmatpush1.bf16.msra.mxu0 %v2872
    %3002 = vmatprep.subr.bf16.mxu0 %v2875
    %3003 = vmatpush1.bf16.msra.mxu0 %v2874
    %3004 = vmatprep.subr.bf16.mxu0 %v2877
    %3005 = vmatpush1.bf16.msra.mxu0 %v2876
    %3006 = vmatprep.subr.bf16.mxu0 %v2879
    %3007 = vmatpush1.bf16.msra.mxu0 %v2878
    %3008 = vmatprep.subr.bf16.mxu0 %v2881
    %3009 = vmatpush1.bf16.msra.mxu0 %v2880
    %3010 = vmatprep.subr.bf16.mxu0 %v2883
    %3011 = vmatpush1.bf16.msra.mxu0 %v2882
    %3012 = vmatprep.subr.bf16.mxu0 %v2885
    %3013 = vmatpush1.bf16.msra.mxu0 %v2884
    %3014 = vmatprep.subr.bf16.mxu0 %v2887
    %3015 = vmatpush1.bf16.msra.mxu0 %v2886
    %3016 = vmatprep.subr.bf16.mxu0 %v2889
    %3017 = vmatpush1.bf16.msra.mxu0 %v2888
    %3018 = vmatprep.subr.bf16.mxu0 %v2891
    %3019 = vmatpush1.bf16.msra.mxu0 %v2890
    %3020 = vmatprep.subr.bf16.mxu0 %v2893
    %3021 = vmatpush1.bf16.msra.mxu0 %v2892
    %3022 = vmatprep.subr.bf16.mxu0 %v2895
    %3023 = vmatpush1.bf16.msra.mxu0 %v2894
    %3024 = vmatprep.subr.bf16.mxu0 %v2897
    %3025 = vmatpush1.bf16.msra.mxu0 %v2896
    %3026 = vmatprep.mubr.bf16.mxu0 %v2596
    %3027 = vmatmul.mubr.bf16.gmra.mrb[0].mxu0 %v2595
    %v3028 = vpop.f32.mrb[0].mxu0
    %v3029 = vadd.f32 %v2667, %v3028
    %v3030 = vpop.f32.mrb[0].mxu0
    %v3031 = vadd.f32 %v2671, %v3030
    %v3032 = vpop.f32.mrb[0].mxu0
    %v3033 = vpop.f32.mrb[0].mxu0
    %3034 = vdwg.mxu0
    %3035 = vmatprep.subr.bf16.mxu0 %v2899
    %3036 = vmatpush1.bf16.msra.mxu0 %v2898
    %3037 = vmatprep.subr.bf16.mxu0 %v2901
    %3038 = vmatpush1.bf16.msra.mxu0 %v2900
    %3039 = vmatprep.subr.bf16.mxu0 %v2903
    %3040 = vmatpush1.bf16.msra.mxu0 %v2902
    %3041 = vmatprep.subr.bf16.mxu0 %v2905
    %3042 = vmatpush1.bf16.msra.mxu0 %v2904
    %3043 = vmatprep.subr.bf16.mxu0 %v2907
    %3044 = vmatpush1.bf16.msra.mxu0 %v2906
    %3045 = vmatprep.subr.bf16.mxu0 %v2909
    %3046 = vmatpush1.bf16.msra.mxu0 %v2908
    %3047 = vmatprep.subr.bf16.mxu0 %v2911
    %3048 = vmatpush1.bf16.msra.mxu0 %v2910
    %3049 = vmatprep.subr.bf16.mxu0 %v2913
    %3050 = vmatpush1.bf16.msra.mxu0 %v2912
    %3051 = vmatprep.subr.bf16.mxu0 %v2915
    %3052 = vmatpush1.bf16.msra.mxu0 %v2914
    %3053 = vmatprep.subr.bf16.mxu0 %v2917
    %3054 = vmatpush1.bf16.msra.mxu0 %v2916
    %3055 = vmatprep.subr.bf16.mxu0 %v2919
    %3056 = vmatpush1.bf16.msra.mxu0 %v2918
    %3057 = vmatprep.subr.bf16.mxu0 %v2921
    %3058 = vmatpush1.bf16.msra.mxu0 %v2920
    %3059 = vmatprep.subr.bf16.mxu0 %v2923
    %3060 = vmatpush1.bf16.msra.mxu0 %v2922
    %3061 = vmatprep.subr.bf16.mxu0 %v2925
    %3062 = vmatpush1.bf16.msra.mxu0 %v2924
    %3063 = vmatprep.subr.bf16.mxu0 %v2927
    %3064 = vmatpush1.bf16.msra.mxu0 %v2926
    %3065 = vmatprep.subr.bf16.mxu0 %v2929
    %3066 = vmatpush1.bf16.msra.mxu0 %v2928
    %3067 = vmatprep.mubr.bf16.mxu0 %v2598
    %3068 = vmatmul.mubr.bf16.gmra.mrb[0].mxu0 %v2597
    %v3069 = vpop.f32.mrb[0].mxu0
    %v3070 = vadd.f32 %v3029, %v3069
    %v3071 = vpop.f32.mrb[0].mxu0
    %v3072 = vadd.f32 %v3031, %v3071
    %v3073 = vpop.f32.mrb[0].mxu0
    %v3074 = vpop.f32.mrb[0].mxu0
    %3075 = vdwg.mxu0
    %v3076 = vmax.f32 %v3070, 0.0
    %v3077 = vmax.f32 %v3072, 0.0
    %v3078 = vld [vmem:[%s6 + $0xe] sm:$0x1]
    %v3079 = vpack.c.bf16 %v3076, %v3076
    %v3080 = vpack.c.bf16 %v3077, %v3077
    %v3081 = vld [vmem:[#allocation8] sm:$0xf]
    %v3082 = vld [vmem:[#allocation8 + $0x4] sm:$0xf]
    %v3083 = vld [vmem:[#allocation8 + $0x8] sm:$0xf]
    %v3084 = vld [vmem:[#allocation8 + $0xc] sm:$0xf]
    %v3085 = vld [vmem:[#allocation8 + $0x10] sm:$0xf]
    %v3086 = vld [vmem:[#allocation8 + $0x14] sm:$0xf]
    %v3087 = vld [vmem:[#allocation8 + $0x18] sm:$0xf]
    %v3088 = vld [vmem:[#allocation8 + $0x1c] sm:$0xf]
    %v3089 = vld [vmem:[#allocation8 + $0x20] sm:$0xf]
    %v3090 = vld [vmem:[#allocation8 + $0x24] sm:$0xf]
    %v3091 = vld [vmem:[#allocation8 + $0x28] sm:$0xf]
    %v3092 = vld [vmem:[#allocation8 + $0x2c] sm:$0xf]
    %v3093 = vld [vmem:[#allocation8 + $0x30] sm:$0xf]
    %v3094 = vld [vmem:[#allocation8 + $0x34] sm:$0xf]
    %v3095 = vld [vmem:[#allocation8 + $0x38] sm:$0xf]
    %v3096 = vld [vmem:[#allocation8 + $0x3c] sm:$0xf]
    %v3097 = vld [vmem:[#allocation8 + $0x40] sm:$0xf]
    %v3098 = vld [vmem:[#allocation8 + $0x44] sm:$0xf]
    %v3099 = vld [vmem:[#allocation8 + $0x48] sm:$0xf]
    %v3100 = vld [vmem:[#allocation8 + $0x4c] sm:$0xf]
    %v3101 = vld [vmem:[#allocation8 + $0x50] sm:$0xf]
    %v3102 = vld [vmem:[#allocation8 + $0x54] sm:$0xf]
    %v3103 = vld [vmem:[#allocation8 + $0x58] sm:$0xf]
    %v3104 = vld [vmem:[#allocation8 + $0x5c] sm:$0xf]
    %v3105 = vld [vmem:[#allocation8 + $0x60] sm:$0xf]
    %v3106 = vld [vmem:[#allocation8 + $0x64] sm:$0xf]
    %v3107 = vld [vmem:[#allocation8 + $0x68] sm:$0xf]
    %v3108 = vld [vmem:[#allocation8 + $0x6c] sm:$0xf]
    %v3109 = vld [vmem:[#allocation8 + $0x70] sm:$0xf]
    %v3110 = vld [vmem:[#allocation8 + $0x74] sm:$0xf]
    %v3111 = vld [vmem:[#allocation8 + $0x78] sm:$0xf]
    %v3112 = vld [vmem:[#allocation8 + $0x7c] sm:$0xf]
    %v3114 = vlaneseq
    %v3115 = vshrl.u32 %v3114, 7
    %v3116 = vsub.s32 0, %v3115
    %v3117 = vrot.slane %v3078, %v3116
    %v3151 = vunpack.c.l.b16 %v3081
    %v3152 = vunpack.c.l.b16 %v3082
    %v3153 = vunpack.c.l.b16 %v3083
    %v3154 = vunpack.c.l.b16 %v3084
    %v3155 = vunpack.c.l.b16 %v3085
    %v3156 = vunpack.c.l.b16 %v3086
    %v3157 = vunpack.c.l.b16 %v3087
    %v3158 = vunpack.c.l.b16 %v3088
    %v3159 = vunpack.c.l.b16 %v3089
    %v3160 = vunpack.c.l.b16 %v3090
    %v3161 = vunpack.c.l.b16 %v3091
    %v3162 = vunpack.c.l.b16 %v3092
    %v3163 = vunpack.c.l.b16 %v3093
    %v3164 = vunpack.c.l.b16 %v3094
    %v3165 = vunpack.c.l.b16 %v3095
    %v3166 = vunpack.c.l.b16 %v3096
    %v3167 = vunpack.c.l.b16 %v3097
    %v3168 = vunpack.c.l.b16 %v3098
    %v3169 = vunpack.c.l.b16 %v3099
    %v3170 = vunpack.c.l.b16 %v3100
    %v3171 = vunpack.c.l.b16 %v3101
    %v3172 = vunpack.c.l.b16 %v3102
    %v3173 = vunpack.c.l.b16 %v3103
    %v3174 = vunpack.c.l.b16 %v3104
    %v3175 = vunpack.c.l.b16 %v3105
    %v3176 = vunpack.c.l.b16 %v3106
    %v3177 = vunpack.c.l.b16 %v3107
    %v3178 = vunpack.c.l.b16 %v3108
    %v3179 = vunpack.c.l.b16 %v3109
    %v3180 = vunpack.c.l.b16 %v3110
    %v3181 = vunpack.c.l.b16 %v3111
    %v3182 = vunpack.c.l.b16 %v3112
    %v3183 = vpack.c.b16 %v3152, %v3151
    %v3184 = vpack.c.b16 %v3154, %v3153
    %v3185 = vpack.c.b16 %v3156, %v3155
    %v3186 = vpack.c.b16 %v3158, %v3157
    %v3187 = vpack.c.b16 %v3160, %v3159
    %v3188 = vpack.c.b16 %v3162, %v3161
    %v3189 = vpack.c.b16 %v3164, %v3163
    %v3190 = vpack.c.b16 %v3166, %v3165
    %v3191 = vpack.c.b16 %v3168, %v3167
    %v3192 = vpack.c.b16 %v3170, %v3169
    %v3193 = vpack.c.b16 %v3172, %v3171
    %v3194 = vpack.c.b16 %v3174, %v3173
    %v3195 = vpack.c.b16 %v3176, %v3175
    %v3196 = vpack.c.b16 %v3178, %v3177
    %v3197 = vpack.c.b16 %v3180, %v3179
    %v3198 = vpack.c.b16 %v3182, %v3181
    %3215 = vmatprep.subr.bf16.mxu0 0
    %3216 = vmatpush1.bf16.msra.mxu0 %v3183
    %3217 = vmatprep.subr.bf16.mxu0 0
    %3218 = vmatpush1.bf16.msra.mxu0 %v3184
    %3219 = vmatprep.subr.bf16.mxu0 0
    %3220 = vmatpush1.bf16.msra.mxu0 %v3185
    %3221 = vmatprep.subr.bf16.mxu0 0
    %3222 = vmatpush1.bf16.msra.mxu0 %v3186
    %3223 = vmatprep.subr.bf16.mxu0 0
    %3224 = vmatpush1.bf16.msra.mxu0 %v3187
    %3225 = vmatprep.subr.bf16.mxu0 0
    %3226 = vmatpush1.bf16.msra.mxu0 %v3188
    %3227 = vmatprep.subr.bf16.mxu0 0
    %3228 = vmatpush1.bf16.msra.mxu0 %v3189
    %3229 = vmatprep.subr.bf16.mxu0 0
    %3230 = vmatpush1.bf16.msra.mxu0 %v3190
    %3231 = vmatprep.subr.bf16.mxu0 0
    %3232 = vmatpush1.bf16.msra.mxu0 %v3191
    %3233 = vmatprep.subr.bf16.mxu0 0
    %3234 = vmatpush1.bf16.msra.mxu0 %v3192
    %3235 = vmatprep.subr.bf16.mxu0 0
    %3236 = vmatpush1.bf16.msra.mxu0 %v3193
    %3237 = vmatprep.subr.bf16.mxu0 0
    %3238 = vmatpush1.bf16.msra.mxu0 %v3194
    %3239 = vmatprep.subr.bf16.mxu0 0
    %3240 = vmatpush1.bf16.msra.mxu0 %v3195
    %3241 = vmatprep.subr.bf16.mxu0 0
    %3242 = vmatpush1.bf16.msra.mxu0 %v3196
    %3243 = vmatprep.subr.bf16.mxu0 0
    %3244 = vmatpush1.bf16.msra.mxu0 %v3197
    %3245 = vmatprep.subr.bf16.mxu0 0
    %3246 = vmatpush1.bf16.msra.mxu0 %v3198
    %3247 = vmatprep.mubr.bf16.mxu0 %v3080
    %3248 = vmatmul.mubr.bf16.gmra.mrb[0].mxu0 %v3079
    %v3249 = vpop.f32.mrb[0].mxu0
    %v3250 = vadd.f32 %v3117, %v3249
    %v3251 = vpop.f32.mrb[0].mxu0
    %v3252 = vpop.f32.mrb[0].mxu0
    %v3253 = vpop.f32.mrb[0].mxu0
    %3254 = vdwg.mxu0
    %v3255 = vmax.f32 %v3250, 0.0
    %v3256 = vld [vmem:[%s6 + $0xf] sm:$0x1]
    %v3257 = vld [vmem:[#allocation10] sm:$0xff]
    %v3258 = vld [vmem:[#allocation10 + $0x8] sm:$0xff]
    %v3259 = vld [vmem:[#allocation10 + $0x10] sm:$0xff]
    %v3260 = vld [vmem:[#allocation10 + $0x18] sm:$0xff]
    %v3261 = vld [vmem:[#allocation10 + $0x20] sm:$0xff]
    %v3262 = vld [vmem:[#allocation10 + $0x28] sm:$0xff]
    %v3263 = vld [vmem:[#allocation10 + $0x30] sm:$0xff]
    %v3264 = vld [vmem:[#allocation10 + $0x38] sm:$0xff]
    %v3265 = vld [vmem:[#allocation10 + $0x40] sm:$0xff]
    %v3266 = vld [vmem:[#allocation10 + $0x48] sm:$0xff]
    %v3267 = vld [vmem:[#allocation10 + $0x50] sm:$0xff]
    %v3268 = vld [vmem:[#allocation10 + $0x58] sm:$0xff]
    %v3269 = vld [vmem:[#allocation10 + $0x60] sm:$0xff]
    %v3270 = vld [vmem:[#allocation10 + $0x68] sm:$0xff]
    %v3271 = vld [vmem:[#allocation10 + $0x70] sm:$0xff]
    %v3272 = vld [vmem:[#allocation10 + $0x78] sm:$0xff]
    %v3274 = vlaneseq
    %v3275 = vshrl.u32 %v3274, 7
    %v3276 = vsub.s32 0, %v3275
    %v3277 = vrot.slane %v3256, %v3276
    %3279 = vmatprep.subr.mxu0 0.0
    %3280 = vmatpush1.msra.mxu0 %v3257
    %3281 = vmatprep.subr.mxu0 0.0
    %3282 = vmatpush1.msra.mxu0 %v3258
    %3283 = vmatprep.subr.mxu0 0.0
    %3284 = vmatpush1.msra.mxu0 %v3259
    %3285 = vmatprep.subr.mxu0 0.0
    %3286 = vmatpush1.msra.mxu0 %v3260
    %3287 = vmatprep.subr.mxu0 0.0
    %3288 = vmatpush1.msra.mxu0 %v3261
    %3289 = vmatprep.subr.mxu0 0.0
    %3290 = vmatpush1.msra.mxu0 %v3262
    %3291 = vmatprep.subr.mxu0 0.0
    %3292 = vmatpush1.msra.mxu0 %v3263
    %3293 = vmatprep.subr.mxu0 0.0
    %3294 = vmatpush1.msra.mxu0 %v3264
    %3295 = vmatprep.subr.mxu0 0.0
    %3296 = vmatpush1.msra.mxu0 %v3265
    %3297 = vmatprep.subr.mxu0 0.0
    %3298 = vmatpush1.msra.mxu0 %v3266
    %3299 = vmatprep.subr.mxu0 0.0
    %3300 = vmatpush1.msra.mxu0 %v3267
    %3301 = vmatprep.subr.mxu0 0.0
    %3302 = vmatpush1.msra.mxu0 %v3268
    %3303 = vmatprep.subr.mxu0 0.0
    %3304 = vmatpush1.msra.mxu0 %v3269
    %3305 = vmatprep.subr.mxu0 0.0
    %3306 = vmatpush1.msra.mxu0 %v3270
    %3307 = vmatprep.subr.mxu0 0.0
    %3308 = vmatpush1.msra.mxu0 %v3271
    %3309 = vmatprep.subr.mxu0 0.0
    %3310 = vmatpush1.msra.mxu0 %v3272
    %3311 = vmatprep.subr.mxu0 0.0
    %3312 = vmatpush1.msra.mxu0 0.0
    %3313 = vmatprep.subr.mxu0 0.0
    %3314 = vmatpush1.msra.mxu0 0.0
    %3315 = vmatprep.subr.mxu0 0.0
    %3316 = vmatpush1.msra.mxu0 0.0
    %3317 = vmatprep.subr.mxu0 0.0
    %3318 = vmatpush1.msra.mxu0 0.0
    %3319 = vmatprep.subr.mxu0 0.0
    %3320 = vmatpush1.msra.mxu0 0.0
    %3321 = vmatprep.subr.mxu0 0.0
    %3322 = vmatpush1.msra.mxu0 0.0
    %3323 = vmatprep.subr.mxu0 0.0
    %3324 = vmatpush1.msra.mxu0 0.0
    %3325 = vmatprep.subr.mxu0 0.0
    %3326 = vmatpush1.msra.mxu0 0.0
    %3327 = vmatprep.subr.mxu0 0.0
    %3328 = vmatpush1.msra.mxu0 0.0
    %3329 = vmatprep.subr.mxu0 0.0
    %3330 = vmatpush1.msra.mxu0 0.0
    %3331 = vmatprep.subr.mxu0 0.0
    %3332 = vmatpush1.msra.mxu0 0.0
    %3333 = vmatprep.subr.mxu0 0.0
    %3334 = vmatpush1.msra.mxu0 0.0
    %3335 = vmatprep.subr.mxu0 0.0
    %3336 = vmatpush1.msra.mxu0 0.0
    %3337 = vmatprep.subr.mxu0 0.0
    %3338 = vmatpush1.msra.mxu0 0.0
    %3339 = vmatprep.subr.mxu0 0.0
    %3340 = vmatpush1.msra.mxu0 0.0
    %3341 = vmatprep.subr.mxu0 0.0
    %3342 = vmatpush1.msra.mxu0 0.0
    %3343 = vmatprep.mubr.f32.mxu0 0.0
    %3344 = vmatmul.mubr.f32.gmra.mrb[0].mxu0 %v3255
    %v3345 = vpop.f32.mrb[0].mxu0
    %v3346 = vadd.f32 %v3277, %v3345
    %v3347 = vpop.f32.mrb[0].mxu0
    %3348 = vdwg.mxu0
    %3349 = vst [vmem:[#allocation11] sm:$0xff] %v3346
    // Predicated region
    $region50: #{fcn_forward.1} parent=1 // pred_check
      _
    $region51: #{fcn_forward.1} parent=1 // pred_check_branch
      %3351 = sbr.rel (0) target = $region53
    $region52: #{fcn_forward.1} parent=1 // pred_region
      %s3353 = ssub.s32 128, 128
      %3354 = vsyncadd [#allocation4], %s3353
      %s3356 = sshll.u32 [#allocation11], 4
      %s3357 = int_to_ptr.vmem [resolvable:$true] %s3356
      %3359 = dma.vmem_to_hbm [thread:$0]  %s3357, 128, %s7, [#allocation4]
    $region53: #{fcn_forward.1} parent=1 // pred_fallthru
      _
    // Predicated region
    $region54: #{fcn_forward.1} parent=1 // pred_check
      _
    $region55: #{fcn_forward.1} parent=1 // pred_check_branch
      %3361 = sbr.rel (0) target = $region57
    $region56: #{fcn_forward.1} parent=1 // pred_region
      %3362 = dma.done [#allocation4], 128
    $region57: #{fcn_forward.1} parent=1 // pred_fallthru
      _
    %3363 = vsyncpa [#allocation3], 1
    %3364 = vsyncpa [#allocation6], 1
    %3365 = vsyncpa [#allocation9], 1
    %3366 = vsyncpa [#allocation4], 1

</llo_original>
